<compile_context>
chip_gen: v5e
topology: v5e:2x2
jax: 0.10.0
libtpu: 0.0.40
codegen_flags: <defaults>
</compile_context>

<pallas_src>
import jax
import jax.numpy as jnp
import numpy as np
from jax import lax
from jax.experimental import pallas as pl
from jax.experimental.pallas import tpu as pltpu


def _fused_kernel(subj_ref, rel_ref, obj_ref, b_out_ref,          # SMEM
                  ent_emb_ref, rel_emb_ref,                        # VMEM embedding tables
                  w_ih_ref, w_hh_ref, b_lstm_ref,                  # VMEM LSTM weights
                  w_mlp_s_ref, w_mlp_h_ref, w_mlp_o_ref, b_mlp_ref, w_out_ref,  # VMEM head
                  out_ref,
                  s_buf, o_buf, r_buf, xg_ref):                    # VMEM scratch
    """In-kernel gathers + backward-direction LSTM + MLP + sigmoid head, fully in VMEM."""
    B = subj_ref.shape[0]                # real batch (static)
    T = rel_ref.shape[1]                 # timesteps (static)
    Bp, E = s_buf.shape                  # sublane-padded batch, embedding dim
    H = w_hh_ref.shape[0]                # true hidden size (un-padded contraction dim)
    HP = w_hh_ref.shape[1] // 4          # lane-padded per-gate width (128)

    # Zero the gather staging buffers so padded batch rows stay benign.
    s_buf[...] = jnp.zeros_like(s_buf)
    o_buf[...] = jnp.zeros_like(o_buf)
    r_buf[...] = jnp.zeros_like(r_buf)

    # In-kernel embedding gathers: scalar indices from SMEM, table rows from VMEM.
    # Relation rows are laid out time-major (row = t*Bp + b) for the recurrence.
    for b in range(B):
        s_buf[b:b + 1, :] = ent_emb_ref[pl.ds(subj_ref[b, 0], 1), :]
        o_buf[b:b + 1, :] = ent_emb_ref[pl.ds(obj_ref[b, 0], 1), :]
        for t in range(T):
            row = t * Bp + b
            r_buf[row:row + 1, :] = rel_emb_ref[pl.ds(rel_ref[b, t], 1), :]

    # Hoisted input projection (LSTM bias folded in), staged in a VMEM scratch so it is
    # NOT live as SSA vregs across the unrolled recurrence (avoids register spills).
    xg_ref[...] = (jnp.dot(r_buf[...], w_ih_ref[...],
                           preferred_element_type=jnp.float32) + b_lstm_ref[...])  # (T*Bp, 4*HP)

    h = jnp.zeros((Bp, HP), jnp.float32)
    c = jnp.zeros((Bp, HP), jnp.float32)

    # Backward direction: t = T-1, ..., 0.  State after t == 0 is PyTorch's h_n[-1].
    # Fully unrolled (T small & static); h/c stay in vregs.  Only the live H lanes of h
    # feed the per-step MXU push (K = H = 32, not 128); padded lanes of h are provably 0.
    # TODO(synk): stage w_hh in the MXU weight registers once (pltpu.matmul_push_rhs /
    #             matmul_acc_lhs) so the identical RHS is not re-pushed every timestep.
    for t in range(T - 1, -1, -1):
        gates = xg_ref[t * Bp:(t + 1) * Bp, :] + jnp.dot(
            h[:, :H], w_hh_ref[...], preferred_element_type=jnp.float32)   # (Bp, 4*HP)
        # Lane-aligned, whole-vreg gate slices (gate order i, f, g, o).
        i_g = jax.nn.sigmoid(gates[:, 0:HP])
        f_g = jax.nn.sigmoid(gates[:, HP:2 * HP])
        g_g = jnp.tanh(gates[:, 2 * HP:3 * HP])
        o_g = jax.nn.sigmoid(gates[:, 3 * HP:4 * HP])
        c = f_g * c + i_g * g_g
        h = o_g * jnp.tanh(c)

    # concat([s, h_back, o], 1) @ W_mlp == s@Ws + h@Wh + o@Wo  (no in-kernel concat).
    # TODO(synk): on v7x, accumulate the three dots in the MXU result buffer (MRB)
    #             instead of summing on the VPU.
    hidden = (jnp.dot(s_buf[...], w_mlp_s_ref[...], preferred_element_type=jnp.float32)
              + jnp.dot(h[:, :H], w_mlp_h_ref[...], preferred_element_type=jnp.float32)
              + jnp.dot(o_buf[...], w_mlp_o_ref[...], preferred_element_type=jnp.float32)
              + b_mlp_ref[...])                                             # (Bp, 128)
    hidden = jnp.maximum(hidden, 0.0)                                       # F.relu

    # Final N=1 "matmul" as VPU multiply + XLU lane reduce; b_out is a scalar from SMEM.
    logits = jnp.sum(hidden * w_out_ref[...], axis=-1, keepdims=True) + b_out_ref[0, 0]
    out_ref[...] = jnp.broadcast_to(jax.nn.sigmoid(logits), out_ref.shape)  # IS_NEG_ZERO -> Sigmoid


def _pad_gate_cols(w, H, HP):
    """(..., 4*H) -> (..., 4*HP): zero-pad each of the 4 gate slabs from H to HP lanes."""
    lead = w.shape[:-1]
    w4 = w.reshape(lead + (4, H))
    w4 = jnp.pad(w4, [(0, 0)] * len(lead) + [(0, 0), (0, HP - H)])
    return w4.reshape(lead + (4 * HP,))


def prepare_params(params, HP=128, MLP_P=128):
    """One-time weight padding / layout prep (hoisted out of the per-call path)."""
    E = params["ent_emb"].shape[1]
    H = params["w_hh"].shape[0]
    assert H == E, "module requires hidden_dim == embedding_dim (mlp expects 3*embedding_dim)"
    M = params["b_mlp"].shape[1]
    return dict(
        ent_emb=params["ent_emb"],                                           # (Ve, E)
        rel_emb=params["rel_emb"],                                           # (Vr, E)
        w_ih=_pad_gate_cols(params["w_ih"], H, HP),                          # (E, 4*HP)
        w_hh=_pad_gate_cols(params["w_hh"], H, HP),                          # (H, 4*HP)  rows UN-padded
        b_lstm=_pad_gate_cols(params["b_lstm"], H, HP),                      # (1, 4*HP)
        w_mlp_s=jnp.pad(params["w_mlp_s"], ((0, 0), (0, MLP_P - M))),        # (E, 128)
        w_mlp_h=jnp.pad(params["w_mlp_h"], ((0, 0), (0, MLP_P - M))),        # (H, 128)  rows UN-padded
        w_mlp_o=jnp.pad(params["w_mlp_o"], ((0, 0), (0, MLP_P - M))),        # (E, 128)
        b_mlp=jnp.pad(params["b_mlp"], ((0, 0), (0, MLP_P - M))),            # (1, 128)
        w_out=jnp.pad(params["w_out"][:, 0], (0, MLP_P - M)).reshape(1, MLP_P),  # (1, 128)
        b_out=params["b_out"],                                               # (1, 1)
    )


def _forward_impl(prepped, subject, relation, objekt):
    B, T = relation.shape
    E = prepped["ent_emb"].shape[1]
    HP = prepped["w_hh"].shape[1] // 4
    MLP_P = prepped["b_mlp"].shape[1]
    Bp = max(8, ((B + 7) // 8) * 8)                   # sublane-pad batch

    smem = pl.BlockSpec(memory_space=pltpu.MemorySpace.SMEM)
    vmem = pl.BlockSpec(memory_space=pltpu.MemorySpace.VMEM)

    # Single-shot kernel (no grid): total resident data << VMEM on all generations.
    # TODO(synk): for large batch on v7x, block the batch dim with a ('parallel',) grid
    #             so both TensorCores are used; keep the gridless form on v5e/v6e.
    out = pl.pallas_call(
        _fused_kernel,
        out_shape=jax.ShapeDtypeStruct((Bp, MLP_P), jnp.float32),
        in_specs=[smem, smem, smem, smem] + [vmem] * 10,
        out_specs=vmem,
        scratch_shapes=[
            pltpu.VMEM((Bp, E), jnp.float32),          # gathered subject embeddings
            pltpu.VMEM((Bp, E), jnp.float32),          # gathered object embeddings
            pltpu.VMEM((T * Bp, E), jnp.float32),      # gathered relation embeddings (time-major)
            pltpu.VMEM((T * Bp, 4 * HP), jnp.float32)  # staged input-projected gates
        ],
    )(subject, relation, objekt, prepped["b_out"],
      prepped["ent_emb"], prepped["rel_emb"],
      prepped["w_ih"], prepped["w_hh"], prepped["b_lstm"],
      prepped["w_mlp_s"], prepped["w_mlp_h"], prepped["w_mlp_o"], prepped["b_mlp"],
      prepped["w_out"])

    return out[:B, :1]


model_forward = jax.jit(_forward_impl)


def init_params(key, ent_vocab, rel_vocab, E, H):
    ks = jax.random.split(key, 10)

    def u(k, shape, scale):
        return jax.random.uniform(k, shape, jnp.float32, -scale, scale)

    ent_emb = jax.random.normal(ks[0], (ent_vocab, E), jnp.float32)
    rel_emb = jax.random.normal(ks[1], (rel_vocab, E), jnp.float32)

    s = 1.0 / np.sqrt(H)
    # Backward-direction LSTM weights (only h_n[-1] is used downstream).
    w_ih = u(ks[2], (4 * H, E), s).T                   # (E, 4H)
    w_hh = u(ks[3], (4 * H, H), s).T                   # (H, 4H)
    b_lstm = (u(ks[4], (4 * H,), s) + u(ks[5], (4 * H,), s)).reshape(1, 4 * H)

    sm = 1.0 / np.sqrt(3 * E)
    w_mlp = u(ks[6], (100, 3 * E), sm).T               # (3E, 100)
    b_mlp = u(ks[7], (100,), sm).reshape(1, 100)

    so = 1.0 / np.sqrt(100)
    w_out = u(ks[8], (1, 100), so).T                   # (100, 1)
    b_out = u(ks[9], (1,), so).reshape(1, 1)

    return dict(
        ent_emb=ent_emb, rel_emb=rel_emb,
        w_ih=w_ih, w_hh=w_hh, b_lstm=b_lstm,
        w_mlp_s=w_mlp[:E], w_mlp_h=w_mlp[E:E + H], w_mlp_o=w_mlp[E + H:],
        b_mlp=b_mlp, w_out=w_out, b_out=b_out,
    )


def reference(params, subject, relation, objekt):
    """Pure-JAX reference matching the PyTorch forward."""
    s_emb = params["ent_emb"][subject[:, 0]]
    o_emb = params["ent_emb"][objekt[:, 0]]
    r_emb = params["rel_emb"][relation]                # (B, T, E)
    H = params["w_hh"].shape[0]
    B = s_emb.shape[0]

    def cell(carry, x):
        h, c = carry
        gates = x @ params["w_ih"] + h @ params["w_hh"] + params["b_lstm"]
        i_g = jax.nn.sigmoid(gates[:, 0:H])
        f_g = jax.nn.sigmoid(gates[:, H:2 * H])
        g_g = jnp.tanh(gates[:, 2 * H:3 * H])
        o_g = jax.nn.sigmoid(gates[:, 3 * H:4 * H])
        c = f_g * c + i_g * g_g
        h = o_g * jnp.tanh(c)
        return (h, c), None

    r_rev = jnp.transpose(r_emb, (1, 0, 2))[::-1]      # reverse time (backward dir)
    (h, _), _ = lax.scan(cell, (jnp.zeros((B, H)), jnp.zeros((B, H))), r_rev)
    hidden = jax.nn.relu(s_emb @ params["w_mlp_s"] + h @ params["w_mlp_h"]
                         + o_emb @ params["w_mlp_o"] + params["b_mlp"])
    return jax.nn.sigmoid(hidden @ params["w_out"] + params["b_out"])


if __name__ == "__main__":
    B, T, E, H = 2, 8, 32, 32          # hidden_dim == embedding_dim (required by the module)
    ent_vocab, rel_vocab = 50, 20

    key = jax.random.PRNGKey(0)
    kp, ksub, krel, kobj = jax.random.split(key, 4)
    params = init_params(kp, ent_vocab, rel_vocab, E, H)
    prepped = prepare_params(params)   # one-time padding/layout prep (not on the call path)

    subject = jax.random.randint(ksub, (B, 1), 0, ent_vocab, dtype=jnp.int32)
    objekt = jax.random.randint(kobj, (B, 1), 0, ent_vocab, dtype=jnp.int32)
    relation = jax.random.randint(krel, (B, T), 0, rel_vocab, dtype=jnp.int32)

    out = model_forward(prepped, subject, relation, objekt)
    jax.block_until_ready(out)

    ref = reference(params, subject, relation, objekt)
    np.testing.assert_allclose(np.asarray(out), np.asarray(ref), rtol=1e-4, atol=1e-5)

    print("KERNEL_OK")
</pallas_src>

<mosaic_0001>
module attributes {stable_mosaic.version = 11 : i64} {
  func.func @_fused_kernel(%arg0: memref<2x1xi32, #tpu.memory_space<smem>>, %arg1: memref<2x8xi32, #tpu.memory_space<smem>>, %arg2: memref<2x1xi32, #tpu.memory_space<smem>>, %arg3: memref<1x1xf32, #tpu.memory_space<smem>>, %arg4: memref<50x32xf32, #tpu.memory_space<vmem>>, %arg5: memref<20x32xf32, #tpu.memory_space<vmem>>, %arg6: memref<32x512xf32, #tpu.memory_space<vmem>>, %arg7: memref<32x512xf32, #tpu.memory_space<vmem>>, %arg8: memref<1x512xf32, #tpu.memory_space<vmem>>, %arg9: memref<32x128xf32, #tpu.memory_space<vmem>>, %arg10: memref<32x128xf32, #tpu.memory_space<vmem>>, %arg11: memref<32x128xf32, #tpu.memory_space<vmem>>, %arg12: memref<1x128xf32, #tpu.memory_space<vmem>>, %arg13: memref<1x128xf32, #tpu.memory_space<vmem>>, %arg14: memref<8x128xf32, #tpu.memory_space<vmem>>, %arg15: memref<8x32xf32, #tpu.memory_space<vmem>>, %arg16: memref<8x32xf32, #tpu.memory_space<vmem>>, %arg17: memref<64x32xf32, #tpu.memory_space<vmem>>, %arg18: memref<64x512xf32, #tpu.memory_space<vmem>>) attributes {dimension_semantics = [], scalar_prefetch = 0 : i64, scratch_operands = 4 : i64, tpu.core_type = #tpu.core_type<tc>} {
    %cst = arith.constant 0.000000e+00 : f32
    %0 = vector.broadcast %cst : f32 to vector<8x32xf32>
    %c0 = arith.constant 0 : index
    %c0_0 = arith.constant 0 : index
    %1 = vector.load %arg15[%c0, %c0_0] : memref<8x32xf32, #tpu.memory_space<vmem>>, vector<8x32xf32>
    tpu.vector_store %arg15[%c0, %c0_0], %0 {strides = array<i32>} : memref<8x32xf32, #tpu.memory_space<vmem>>, vector<8x32xf32>,
    %cst_1 = arith.constant 0.000000e+00 : f32
    %2 = vector.broadcast %cst_1 : f32 to vector<8x32xf32>
    %c0_2 = arith.constant 0 : index
    %c0_3 = arith.constant 0 : index
    %3 = vector.load %arg16[%c0_2, %c0_3] : memref<8x32xf32, #tpu.memory_space<vmem>>, vector<8x32xf32>
    tpu.vector_store %arg16[%c0_2, %c0_3], %2 {strides = array<i32>} : memref<8x32xf32, #tpu.memory_space<vmem>>, vector<8x32xf32>,
    %cst_4 = arith.constant 0.000000e+00 : f32
    %4 = vector.broadcast %cst_4 : f32 to vector<64x32xf32>
    %c0_5 = arith.constant 0 : index
    %c0_6 = arith.constant 0 : index
    %5 = vector.load %arg17[%c0_5, %c0_6] : memref<64x32xf32, #tpu.memory_space<vmem>>, vector<64x32xf32>
    tpu.vector_store %arg17[%c0_5, %c0_6], %4 {strides = array<i32>} : memref<64x32xf32, #tpu.memory_space<vmem>>, vector<64x32xf32>,
    %c0_7 = arith.constant 0 : index
    %c0_8 = arith.constant 0 : index
    %6 = memref.load %arg0[%c0_7, %c0_8] : memref<2x1xi32, #tpu.memory_space<smem>>
    %7 = arith.index_cast %6 : i32 to index
    %c0_9 = arith.constant 0 : index
    %8 = vector.load %arg4[%7, %c0_9] : memref<50x32xf32, #tpu.memory_space<vmem>>, vector<1x32xf32>
    %c0_10 = arith.constant 0 : index
    %c0_11 = arith.constant 0 : index
    %9 = vector.load %arg15[%c0_10, %c0_11] : memref<8x32xf32, #tpu.memory_space<vmem>>, vector<1x32xf32>
    tpu.vector_store %arg15[%c0_10, %c0_11], %8 {strides = array<i32>} : memref<8x32xf32, #tpu.memory_space<vmem>>, vector<1x32xf32>,
    %c0_12 = arith.constant 0 : index
    %c0_13 = arith.constant 0 : index
    %10 = memref.load %arg2[%c0_12, %c0_13] : memref<2x1xi32, #tpu.memory_space<smem>>
    %11 = arith.index_cast %10 : i32 to index
    %c0_14 = arith.constant 0 : index
    %12 = vector.load %arg4[%11, %c0_14] : memref<50x32xf32, #tpu.memory_space<vmem>>, vector<1x32xf32>
    %c0_15 = arith.constant 0 : index
    %c0_16 = arith.constant 0 : index
    %13 = vector.load %arg16[%c0_15, %c0_16] : memref<8x32xf32, #tpu.memory_space<vmem>>, vector<1x32xf32>
    tpu.vector_store %arg16[%c0_15, %c0_16], %12 {strides = array<i32>} : memref<8x32xf32, #tpu.memory_space<vmem>>, vector<1x32xf32>,
    %c0_17 = arith.constant 0 : index
    %c0_18 = arith.constant 0 : index
    %14 = memref.load %arg1[%c0_17, %c0_18] : memref<2x8xi32, #tpu.memory_space<smem>>
    %15 = arith.index_cast %14 : i32 to index
    %c0_19 = arith.constant 0 : index
    %16 = vector.load %arg5[%15, %c0_19] : memref<20x32xf32, #tpu.memory_space<vmem>>, vector<1x32xf32>
    %c0_20 = arith.constant 0 : index
    %c0_21 = arith.constant 0 : index
    %17 = vector.load %arg17[%c0_20, %c0_21] : memref<64x32xf32, #tpu.memory_space<vmem>>, vector<1x32xf32>
    tpu.vector_store %arg17[%c0_20, %c0_21], %16 {strides = array<i32>} : memref<64x32xf32, #tpu.memory_space<vmem>>, vector<1x32xf32>,
    %c0_22 = arith.constant 0 : index
    %c1 = arith.constant 1 : index
    %18 = memref.load %arg1[%c0_22, %c1] : memref<2x8xi32, #tpu.memory_space<smem>>
    %19 = arith.index_cast %18 : i32 to index
    %c0_23 = arith.constant 0 : index
    %20 = vector.load %arg5[%19, %c0_23] : memref<20x32xf32, #tpu.memory_space<vmem>>, vector<1x32xf32>
    %c8 = arith.constant 8 : index
    %c0_24 = arith.constant 0 : index
    %21 = vector.load %arg17[%c8, %c0_24] : memref<64x32xf32, #tpu.memory_space<vmem>>, vector<1x32xf32>
    tpu.vector_store %arg17[%c8, %c0_24], %20 {strides = array<i32>} : memref<64x32xf32, #tpu.memory_space<vmem>>, vector<1x32xf32>,
    %c0_25 = arith.constant 0 : index
    %c2 = arith.constant 2 : index
    %22 = memref.load %arg1[%c0_25, %c2] : memref<2x8xi32, #tpu.memory_space<smem>>
    %23 = arith.index_cast %22 : i32 to index
    %c0_26 = arith.constant 0 : index
    %24 = vector.load %arg5[%23, %c0_26] : memref<20x32xf32, #tpu.memory_space<vmem>>, vector<1x32xf32>
    %c16 = arith.constant 16 : index
    %c0_27 = arith.constant 0 : index
    %25 = vector.load %arg17[%c16, %c0_27] : memref<64x32xf32, #tpu.memory_space<vmem>>, vector<1x32xf32>
    tpu.vector_store %arg17[%c16, %c0_27], %24 {strides = array<i32>} : memref<64x32xf32, #tpu.memory_space<vmem>>, vector<1x32xf32>,
    %c0_28 = arith.constant 0 : index
    %c3 = arith.constant 3 : index
    %26 = memref.load %arg1[%c0_28, %c3] : memref<2x8xi32, #tpu.memory_space<smem>>
    %27 = arith.index_cast %26 : i32 to index
    %c0_29 = arith.constant 0 : index
    %28 = vector.load %arg5[%27, %c0_29] : memref<20x32xf32, #tpu.memory_space<vmem>>, vector<1x32xf32>
    %c24 = arith.constant 24 : index
    %c0_30 = arith.constant 0 : index
    %29 = vector.load %arg17[%c24, %c0_30] : memref<64x32xf32, #tpu.memory_space<vmem>>, vector<1x32xf32>
    tpu.vector_store %arg17[%c24, %c0_30], %28 {strides = array<i32>} : memref<64x32xf32, #tpu.memory_space<vmem>>, vector<1x32xf32>,
    %c0_31 = arith.constant 0 : index
    %c4 = arith.constant 4 : index
    %30 = memref.load %arg1[%c0_31, %c4] : memref<2x8xi32, #tpu.memory_space<smem>>
    %31 = arith.index_cast %30 : i32 to index
    %c0_32 = arith.constant 0 : index
    %32 = vector.load %arg5[%31, %c0_32] : memref<20x32xf32, #tpu.memory_space<vmem>>, vector<1x32xf32>
    %c32 = arith.constant 32 : index
    %c0_33 = arith.constant 0 : index
    %33 = vector.load %arg17[%c32, %c0_33] : memref<64x32xf32, #tpu.memory_space<vmem>>, vector<1x32xf32>
    tpu.vector_store %arg17[%c32, %c0_33], %32 {strides = array<i32>} : memref<64x32xf32, #tpu.memory_space<vmem>>, vector<1x32xf32>,
    %c0_34 = arith.constant 0 : index
    %c5 = arith.constant 5 : index
    %34 = memref.load %arg1[%c0_34, %c5] : memref<2x8xi32, #tpu.memory_space<smem>>
    %35 = arith.index_cast %34 : i32 to index
    %c0_35 = arith.constant 0 : index
    %36 = vector.load %arg5[%35, %c0_35] : memref<20x32xf32, #tpu.memory_space<vmem>>, vector<1x32xf32>
    %c40 = arith.constant 40 : index
    %c0_36 = arith.constant 0 : index
    %37 = vector.load %arg17[%c40, %c0_36] : memref<64x32xf32, #tpu.memory_space<vmem>>, vector<1x32xf32>
    tpu.vector_store %arg17[%c40, %c0_36], %36 {strides = array<i32>} : memref<64x32xf32, #tpu.memory_space<vmem>>, vector<1x32xf32>,
    %c0_37 = arith.constant 0 : index
    %c6 = arith.constant 6 : index
    %38 = memref.load %arg1[%c0_37, %c6] : memref<2x8xi32, #tpu.memory_space<smem>>
    %39 = arith.index_cast %38 : i32 to index
    %c0_38 = arith.constant 0 : index
    %40 = vector.load %arg5[%39, %c0_38] : memref<20x32xf32, #tpu.memory_space<vmem>>, vector<1x32xf32>
    %c48 = arith.constant 48 : index
    %c0_39 = arith.constant 0 : index
    %41 = vector.load %arg17[%c48, %c0_39] : memref<64x32xf32, #tpu.memory_space<vmem>>, vector<1x32xf32>
    tpu.vector_store %arg17[%c48, %c0_39], %40 {strides = array<i32>} : memref<64x32xf32, #tpu.memory_space<vmem>>, vector<1x32xf32>,
    %c0_40 = arith.constant 0 : index
    %c7 = arith.constant 7 : index
    %42 = memref.load %arg1[%c0_40, %c7] : memref<2x8xi32, #tpu.memory_space<smem>>
    %43 = arith.index_cast %42 : i32 to index
    %c0_41 = arith.constant 0 : index
    %44 = vector.load %arg5[%43, %c0_41] : memref<20x32xf32, #tpu.memory_space<vmem>>, vector<1x32xf32>
    %c56 = arith.constant 56 : index
    %c0_42 = arith.constant 0 : index
    %45 = vector.load %arg17[%c56, %c0_42] : memref<64x32xf32, #tpu.memory_space<vmem>>, vector<1x32xf32>
    tpu.vector_store %arg17[%c56, %c0_42], %44 {strides = array<i32>} : memref<64x32xf32, #tpu.memory_space<vmem>>, vector<1x32xf32>,
    %c1_43 = arith.constant 1 : index
    %c0_44 = arith.constant 0 : index
    %46 = memref.load %arg0[%c1_43, %c0_44] : memref<2x1xi32, #tpu.memory_space<smem>>
    %47 = arith.index_cast %46 : i32 to index
    %c0_45 = arith.constant 0 : index
    %48 = vector.load %arg4[%47, %c0_45] : memref<50x32xf32, #tpu.memory_space<vmem>>, vector<1x32xf32>
    %c1_46 = arith.constant 1 : index
    %c0_47 = arith.constant 0 : index
    %49 = vector.load %arg15[%c1_46, %c0_47] : memref<8x32xf32, #tpu.memory_space<vmem>>, vector<1x32xf32>
    tpu.vector_store %arg15[%c1_46, %c0_47], %48 {strides = array<i32>} : memref<8x32xf32, #tpu.memory_space<vmem>>, vector<1x32xf32>,
    %c1_48 = arith.constant 1 : index
    %c0_49 = arith.constant 0 : index
    %50 = memref.load %arg2[%c1_48, %c0_49] : memref<2x1xi32, #tpu.memory_space<smem>>
    %51 = arith.index_cast %50 : i32 to index
    %c0_50 = arith.constant 0 : index
    %52 = vector.load %arg4[%51, %c0_50] : memref<50x32xf32, #tpu.memory_space<vmem>>, vector<1x32xf32>
    %c1_51 = arith.constant 1 : index
    %c0_52 = arith.constant 0 : index
    %53 = vector.load %arg16[%c1_51, %c0_52] : memref<8x32xf32, #tpu.memory_space<vmem>>, vector<1x32xf32>
    tpu.vector_store %arg16[%c1_51, %c0_52], %52 {strides = array<i32>} : memref<8x32xf32, #tpu.memory_space<vmem>>, vector<1x32xf32>,
    %c1_53 = arith.constant 1 : index
    %c0_54 = arith.constant 0 : index
    %54 = memref.load %arg1[%c1_53, %c0_54] : memref<2x8xi32, #tpu.memory_space<smem>>
    %55 = arith.index_cast %54 : i32 to index
    %c0_55 = arith.constant 0 : index
    %56 = vector.load %arg5[%55, %c0_55] : memref<20x32xf32, #tpu.memory_space<vmem>>, vector<1x32xf32>
    %c1_56 = arith.constant 1 : index
    %c0_57 = arith.constant 0 : index
    %57 = vector.load %arg17[%c1_56, %c0_57] : memref<64x32xf32, #tpu.memory_space<vmem>>, vector<1x32xf32>
    tpu.vector_store %arg17[%c1_56, %c0_57], %56 {strides = array<i32>} : memref<64x32xf32, #tpu.memory_space<vmem>>, vector<1x32xf32>,
    %c1_58 = arith.constant 1 : index
    %c1_59 = arith.constant 1 : index
    %58 = memref.load %arg1[%c1_58, %c1_59] : memref<2x8xi32, #tpu.memory_space<smem>>
    %59 = arith.index_cast %58 : i32 to index
    %c0_60 = arith.constant 0 : index
    %60 = vector.load %arg5[%59, %c0_60] : memref<20x32xf32, #tpu.memory_space<vmem>>, vector<1x32xf32>
    %c9 = arith.constant 9 : index
    %c0_61 = arith.constant 0 : index
    %61 = vector.load %arg17[%c9, %c0_61] : memref<64x32xf32, #tpu.memory_space<vmem>>, vector<1x32xf32>
    tpu.vector_store %arg17[%c9, %c0_61], %60 {strides = array<i32>} : memref<64x32xf32, #tpu.memory_space<vmem>>, vector<1x32xf32>,
    %c1_62 = arith.constant 1 : index
    %c2_63 = arith.constant 2 : index
    %62 = memref.load %arg1[%c1_62, %c2_63] : memref<2x8xi32, #tpu.memory_space<smem>>
    %63 = arith.index_cast %62 : i32 to index
    %c0_64 = arith.constant 0 : index
    %64 = vector.load %arg5[%63, %c0_64] : memref<20x32xf32, #tpu.memory_space<vmem>>, vector<1x32xf32>
    %c17 = arith.constant 17 : index
    %c0_65 = arith.constant 0 : index
    %65 = vector.load %arg17[%c17, %c0_65] : memref<64x32xf32, #tpu.memory_space<vmem>>, vector<1x32xf32>
    tpu.vector_store %arg17[%c17, %c0_65], %64 {strides = array<i32>} : memref<64x32xf32, #tpu.memory_space<vmem>>, vector<1x32xf32>,
    %c1_66 = arith.constant 1 : index
    %c3_67 = arith.constant 3 : index
    %66 = memref.load %arg1[%c1_66, %c3_67] : memref<2x8xi32, #tpu.memory_space<smem>>
    %67 = arith.index_cast %66 : i32 to index
    %c0_68 = arith.constant 0 : index
    %68 = vector.load %arg5[%67, %c0_68] : memref<20x32xf32, #tpu.memory_space<vmem>>, vector<1x32xf32>
    %c25 = arith.constant 25 : index
    %c0_69 = arith.constant 0 : index
    %69 = vector.load %arg17[%c25, %c0_69] : memref<64x32xf32, #tpu.memory_space<vmem>>, vector<1x32xf32>
    tpu.vector_store %arg17[%c25, %c0_69], %68 {strides = array<i32>} : memref<64x32xf32, #tpu.memory_space<vmem>>, vector<1x32xf32>,
    %c1_70 = arith.constant 1 : index
    %c4_71 = arith.constant 4 : index
    %70 = memref.load %arg1[%c1_70, %c4_71] : memref<2x8xi32, #tpu.memory_space<smem>>
    %71 = arith.index_cast %70 : i32 to index
    %c0_72 = arith.constant 0 : index
    %72 = vector.load %arg5[%71, %c0_72] : memref<20x32xf32, #tpu.memory_space<vmem>>, vector<1x32xf32>
    %c33 = arith.constant 33 : index
    %c0_73 = arith.constant 0 : index
    %73 = vector.load %arg17[%c33, %c0_73] : memref<64x32xf32, #tpu.memory_space<vmem>>, vector<1x32xf32>
    tpu.vector_store %arg17[%c33, %c0_73], %72 {strides = array<i32>} : memref<64x32xf32, #tpu.memory_space<vmem>>, vector<1x32xf32>,
    %c1_74 = arith.constant 1 : index
    %c5_75 = arith.constant 5 : index
    %74 = memref.load %arg1[%c1_74, %c5_75] : memref<2x8xi32, #tpu.memory_space<smem>>
    %75 = arith.index_cast %74 : i32 to index
    %c0_76 = arith.constant 0 : index
    %76 = vector.load %arg5[%75, %c0_76] : memref<20x32xf32, #tpu.memory_space<vmem>>, vector<1x32xf32>
    %c41 = arith.constant 41 : index
    %c0_77 = arith.constant 0 : index
    %77 = vector.load %arg17[%c41, %c0_77] : memref<64x32xf32, #tpu.memory_space<vmem>>, vector<1x32xf32>
    tpu.vector_store %arg17[%c41, %c0_77], %76 {strides = array<i32>} : memref<64x32xf32, #tpu.memory_space<vmem>>, vector<1x32xf32>,
    %c1_78 = arith.constant 1 : index
    %c6_79 = arith.constant 6 : index
    %78 = memref.load %arg1[%c1_78, %c6_79] : memref<2x8xi32, #tpu.memory_space<smem>>
    %79 = arith.index_cast %78 : i32 to index
    %c0_80 = arith.constant 0 : index
    %80 = vector.load %arg5[%79, %c0_80] : memref<20x32xf32, #tpu.memory_space<vmem>>, vector<1x32xf32>
    %c49 = arith.constant 49 : index
    %c0_81 = arith.constant 0 : index
    %81 = vector.load %arg17[%c49, %c0_81] : memref<64x32xf32, #tpu.memory_space<vmem>>, vector<1x32xf32>
    tpu.vector_store %arg17[%c49, %c0_81], %80 {strides = array<i32>} : memref<64x32xf32, #tpu.memory_space<vmem>>, vector<1x32xf32>,
    %c1_82 = arith.constant 1 : index
    %c7_83 = arith.constant 7 : index
    %82 = memref.load %arg1[%c1_82, %c7_83] : memref<2x8xi32, #tpu.memory_space<smem>>
    %83 = arith.index_cast %82 : i32 to index
    %c0_84 = arith.constant 0 : index
    %84 = vector.load %arg5[%83, %c0_84] : memref<20x32xf32, #tpu.memory_space<vmem>>, vector<1x32xf32>
    %c57 = arith.constant 57 : index
    %c0_85 = arith.constant 0 : index
    %85 = vector.load %arg17[%c57, %c0_85] : memref<64x32xf32, #tpu.memory_space<vmem>>, vector<1x32xf32>
    tpu.vector_store %arg17[%c57, %c0_85], %84 {strides = array<i32>} : memref<64x32xf32, #tpu.memory_space<vmem>>, vector<1x32xf32>,
    %c0_86 = arith.constant 0 : index
    %c0_87 = arith.constant 0 : index
    %86 = vector.load %arg17[%c0_86, %c0_87] : memref<64x32xf32, #tpu.memory_space<vmem>>, vector<64x32xf32>
    %c0_88 = arith.constant 0 : index
    %c0_89 = arith.constant 0 : index
    %87 = vector.load %arg6[%c0_88, %c0_89] : memref<32x512xf32, #tpu.memory_space<vmem>>, vector<32x512xf32>
    %cst_90 = arith.constant dense<0.000000e+00> : vector<64x512xf32>
    %88 = tpu.matmul %86, %87, %cst_90 {dimension_numbers = #tpu.dot_dimension_numbers<[1], [0], [0], [1], [0, 0, 1, 1], [], []>} : vector<64x32xf32>, vector<32x512xf32>, vector<64x512xf32> -> vector<64x512xf32>
    %c0_91 = arith.constant 0 : index
    %c0_92 = arith.constant 0 : index
    %89 = vector.load %arg8[%c0_91, %c0_92] : memref<1x512xf32, #tpu.memory_space<vmem>>, vector<1x512xf32>
    %90 = vector.broadcast %89 : vector<1x512xf32> to vector<64x512xf32>
    %91 = arith.addf %88, %90 : vector<64x512xf32>
    %c0_93 = arith.constant 0 : index
    %c0_94 = arith.constant 0 : index
    %92 = vector.load %arg18[%c0_93, %c0_94] : memref<64x512xf32, #tpu.memory_space<vmem>>, vector<64x512xf32>
    tpu.vector_store %arg18[%c0_93, %c0_94], %91 {strides = array<i32>} : memref<64x512xf32, #tpu.memory_space<vmem>>, vector<64x512xf32>,
    %cst_95 = arith.constant 0.000000e+00 : f32
    %93 = vector.broadcast %cst_95 : f32 to vector<8x128xf32>
    %cst_96 = arith.constant 0.000000e+00 : f32
    %94 = vector.broadcast %cst_96 : f32 to vector<8x128xf32>
    %c56_97 = arith.constant 56 : index
    %c0_98 = arith.constant 0 : index
    %95 = vector.load %arg18[%c56_97, %c0_98] : memref<64x512xf32, #tpu.memory_space<vmem>>, vector<8x512xf32>
    %96 = vector.extract_strided_slice %93 {offsets = [0, 0], sizes = [8, 32], strides = [1, 1]} : vector<8x128xf32> to vector<8x32xf32>
    %c0_99 = arith.constant 0 : index
    %c0_100 = arith.constant 0 : index
    %97 = vector.load %arg7[%c0_99, %c0_100] : memref<32x512xf32, #tpu.memory_space<vmem>>, vector<32x512xf32>
    %cst_101 = arith.constant dense<0.000000e+00> : vector<8x512xf32>
    %98 = tpu.matmul %96, %97, %cst_101 {dimension_numbers = #tpu.dot_dimension_numbers<[1], [0], [0], [1], [0, 0, 1, 1], [], []>} : vector<8x32xf32>, vector<32x512xf32>, vector<8x512xf32> -> vector<8x512xf32>
    %99 = arith.addf %95, %98 : vector<8x512xf32>
    %100 = vector.extract_strided_slice %99 {offsets = [0, 0], sizes = [8, 128], strides = [1, 1]} : vector<8x512xf32> to vector<8x128xf32>
    %101 = arith.negf %100 : vector<8x128xf32>
    %102 = math.exp %101 : vector<8x128xf32>
    %cst_102 = arith.constant 1.000000e+00 : f32
    %103 = vector.broadcast %cst_102 : f32 to vector<8x128xf32>
    %104 = arith.addf %103, %102 : vector<8x128xf32>
    %105 = arith.divf %103, %104 : vector<8x128xf32>
    %106 = vector.extract_strided_slice %99 {offsets = [0, 128], sizes = [8, 128], strides = [1, 1]} : vector<8x512xf32> to vector<8x128xf32>
    %107 = arith.negf %106 : vector<8x128xf32>
    %108 = math.exp %107 : vector<8x128xf32>
    %cst_103 = arith.constant 1.000000e+00 : f32
    %109 = vector.broadcast %cst_103 : f32 to vector<8x128xf32>
    %110 = arith.addf %109, %108 : vector<8x128xf32>
    %111 = arith.divf %109, %110 : vector<8x128xf32>
    %112 = vector.extract_strided_slice %99 {offsets = [0, 256], sizes = [8, 128], strides = [1, 1]} : vector<8x512xf32> to vector<8x128xf32>
    %113 = math.tanh %112 : vector<8x128xf32>
    %114 = vector.extract_strided_slice %99 {offsets = [0, 384], sizes = [8, 128], strides = [1, 1]} : vector<8x512xf32> to vector<8x128xf32>
    %115 = arith.negf %114 : vector<8x128xf32>
    %116 = math.exp %115 : vector<8x128xf32>
    %cst_104 = arith.constant 1.000000e+00 : f32
    %117 = vector.broadcast %cst_104 : f32 to vector<8x128xf32>
    %118 = arith.addf %117, %116 : vector<8x128xf32>
    %119 = arith.divf %117, %118 : vector<8x128xf32>
    %120 = arith.mulf %111, %94 : vector<8x128xf32>
    %121 = arith.mulf %105, %113 : vector<8x128xf32>
    %122 = arith.addf %120, %121 : vector<8x128xf32>
    %123 = math.tanh %122 : vector<8x128xf32>
    %124 = arith.mulf %119, %123 : vector<8x128xf32>
    %c48_105 = arith.constant 48 : index
    %c0_106 = arith.constant 0 : index
    %125 = vector.load %arg18[%c48_105, %c0_106] : memref<64x512xf32, #tpu.memory_space<vmem>>, vector<8x512xf32>
    %126 = vector.extract_strided_slice %124 {offsets = [0, 0], sizes = [8, 32], strides = [1, 1]} : vector<8x128xf32> to vector<8x32xf32>
    %c0_107 = arith.constant 0 : index
    %c0_108 = arith.constant 0 : index
    %127 = vector.load %arg7[%c0_107, %c0_108] : memref<32x512xf32, #tpu.memory_space<vmem>>, vector<32x512xf32>
    %cst_109 = arith.constant dense<0.000000e+00> : vector<8x512xf32>
    %128 = tpu.matmul %126, %127, %cst_109 {dimension_numbers = #tpu.dot_dimension_numbers<[1], [0], [0], [1], [0, 0, 1, 1], [], []>} : vector<8x32xf32>, vector<32x512xf32>, vector<8x512xf32> -> vector<8x512xf32>
    %129 = arith.addf %125, %128 : vector<8x512xf32>
    %130 = vector.extract_strided_slice %129 {offsets = [0, 0], sizes = [8, 128], strides = [1, 1]} : vector<8x512xf32> to vector<8x128xf32>
    %131 = arith.negf %130 : vector<8x128xf32>
    %132 = math.exp %131 : vector<8x128xf32>
    %cst_110 = arith.constant 1.000000e+00 : f32
    %133 = vector.broadcast %cst_110 : f32 to vector<8x128xf32>
    %134 = arith.addf %133, %132 : vector<8x128xf32>
    %135 = arith.divf %133, %134 : vector<8x128xf32>
    %136 = vector.extract_strided_slice %129 {offsets = [0, 128], sizes = [8, 128], strides = [1, 1]} : vector<8x512xf32> to vector<8x128xf32>
    %137 = arith.negf %136 : vector<8x128xf32>
    %138 = math.exp %137 : vector<8x128xf32>
    %cst_111 = arith.constant 1.000000e+00 : f32
    %139 = vector.broadcast %cst_111 : f32 to vector<8x128xf32>
    %140 = arith.addf %139, %138 : vector<8x128xf32>
    %141 = arith.divf %139, %140 : vector<8x128xf32>
    %142 = vector.extract_strided_slice %129 {offsets = [0, 256], sizes = [8, 128], strides = [1, 1]} : vector<8x512xf32> to vector<8x128xf32>
    %143 = math.tanh %142 : vector<8x128xf32>
    %144 = vector.extract_strided_slice %129 {offsets = [0, 384], sizes = [8, 128], strides = [1, 1]} : vector<8x512xf32> to vector<8x128xf32>
    %145 = arith.negf %144 : vector<8x128xf32>
    %146 = math.exp %145 : vector<8x128xf32>
    %cst_112 = arith.constant 1.000000e+00 : f32
    %147 = vector.broadcast %cst_112 : f32 to vector<8x128xf32>
    %148 = arith.addf %147, %146 : vector<8x128xf32>
    %149 = arith.divf %147, %148 : vector<8x128xf32>
    %150 = arith.mulf %141, %122 : vector<8x128xf32>
    %151 = arith.mulf %135, %143 : vector<8x128xf32>
    %152 = arith.addf %150, %151 : vector<8x128xf32>
    %153 = math.tanh %152 : vector<8x128xf32>
    %154 = arith.mulf %149, %153 : vector<8x128xf32>
    %c40_113 = arith.constant 40 : index
    %c0_114 = arith.constant 0 : index
    %155 = vector.load %arg18[%c40_113, %c0_114] : memref<64x512xf32, #tpu.memory_space<vmem>>, vector<8x512xf32>
    %156 = vector.extract_strided_slice %154 {offsets = [0, 0], sizes = [8, 32], strides = [1, 1]} : vector<8x128xf32> to vector<8x32xf32>
    %c0_115 = arith.constant 0 : index
    %c0_116 = arith.constant 0 : index
    %157 = vector.load %arg7[%c0_115, %c0_116] : memref<32x512xf32, #tpu.memory_space<vmem>>, vector<32x512xf32>
    %cst_117 = arith.constant dense<0.000000e+00> : vector<8x512xf32>
    %158 = tpu.matmul %156, %157, %cst_117 {dimension_numbers = #tpu.dot_dimension_numbers<[1], [0], [0], [1], [0, 0, 1, 1], [], []>} : vector<8x32xf32>, vector<32x512xf32>, vector<8x512xf32> -> vector<8x512xf32>
    %159 = arith.addf %155, %158 : vector<8x512xf32>
    %160 = vector.extract_strided_slice %159 {offsets = [0, 0], sizes = [8, 128], strides = [1, 1]} : vector<8x512xf32> to vector<8x128xf32>
    %161 = arith.negf %160 : vector<8x128xf32>
    %162 = math.exp %161 : vector<8x128xf32>
    %cst_118 = arith.constant 1.000000e+00 : f32
    %163 = vector.broadcast %cst_118 : f32 to vector<8x128xf32>
    %164 = arith.addf %163, %162 : vector<8x128xf32>
    %165 = arith.divf %163, %164 : vector<8x128xf32>
    %166 = vector.extract_strided_slice %159 {offsets = [0, 128], sizes = [8, 128], strides = [1, 1]} : vector<8x512xf32> to vector<8x128xf32>
    %167 = arith.negf %166 : vector<8x128xf32>
    %168 = math.exp %167 : vector<8x128xf32>
    %cst_119 = arith.constant 1.000000e+00 : f32
    %169 = vector.broadcast %cst_119 : f32 to vector<8x128xf32>
    %170 = arith.addf %169, %168 : vector<8x128xf32>
    %171 = arith.divf %169, %170 : vector<8x128xf32>
    %172 = vector.extract_strided_slice %159 {offsets = [0, 256], sizes = [8, 128], strides = [1, 1]} : vector<8x512xf32> to vector<8x128xf32>
    %173 = math.tanh %172 : vector<8x128xf32>
    %174 = vector.extract_strided_slice %159 {offsets = [0, 384], sizes = [8, 128], strides = [1, 1]} : vector<8x512xf32> to vector<8x128xf32>
    %175 = arith.negf %174 : vector<8x128xf32>
    %176 = math.exp %175 : vector<8x128xf32>
    %cst_120 = arith.constant 1.000000e+00 : f32
    %177 = vector.broadcast %cst_120 : f32 to vector<8x128xf32>
    %178 = arith.addf %177, %176 : vector<8x128xf32>
    %179 = arith.divf %177, %178 : vector<8x128xf32>
    %180 = arith.mulf %171, %152 : vector<8x128xf32>
    %181 = arith.mulf %165, %173 : vector<8x128xf32>
    %182 = arith.addf %180, %181 : vector<8x128xf32>
    %183 = math.tanh %182 : vector<8x128xf32>
    %184 = arith.mulf %179, %183 : vector<8x128xf32>
    %c32_121 = arith.constant 32 : index
    %c0_122 = arith.constant 0 : index
    %185 = vector.load %arg18[%c32_121, %c0_122] : memref<64x512xf32, #tpu.memory_space<vmem>>, vector<8x512xf32>
    %186 = vector.extract_strided_slice %184 {offsets = [0, 0], sizes = [8, 32], strides = [1, 1]} : vector<8x128xf32> to vector<8x32xf32>
    %c0_123 = arith.constant 0 : index
    %c0_124 = arith.constant 0 : index
    %187 = vector.load %arg7[%c0_123, %c0_124] : memref<32x512xf32, #tpu.memory_space<vmem>>, vector<32x512xf32>
    %cst_125 = arith.constant dense<0.000000e+00> : vector<8x512xf32>
    %188 = tpu.matmul %186, %187, %cst_125 {dimension_numbers = #tpu.dot_dimension_numbers<[1], [0], [0], [1], [0, 0, 1, 1], [], []>} : vector<8x32xf32>, vector<32x512xf32>, vector<8x512xf32> -> vector<8x512xf32>
    %189 = arith.addf %185, %188 : vector<8x512xf32>
    %190 = vector.extract_strided_slice %189 {offsets = [0, 0], sizes = [8, 128], strides = [1, 1]} : vector<8x512xf32> to vector<8x128xf32>
    %191 = arith.negf %190 : vector<8x128xf32>
    %192 = math.exp %191 : vector<8x128xf32>
    %cst_126 = arith.constant 1.000000e+00 : f32
    %193 = vector.broadcast %cst_126 : f32 to vector<8x128xf32>
    %194 = arith.addf %193, %192 : vector<8x128xf32>
    %195 = arith.divf %193, %194 : vector<8x128xf32>
    %196 = vector.extract_strided_slice %189 {offsets = [0, 128], sizes = [8, 128], strides = [1, 1]} : vector<8x512xf32> to vector<8x128xf32>
    %197 = arith.negf %196 : vector<8x128xf32>
    %198 = math.exp %197 : vector<8x128xf32>
    %cst_127 = arith.constant 1.000000e+00 : f32
    %199 = vector.broadcast %cst_127 : f32 to vector<8x128xf32>
    %200 = arith.addf %199, %198 : vector<8x128xf32>
    %201 = arith.divf %199, %200 : vector<8x128xf32>
    %202 = vector.extract_strided_slice %189 {offsets = [0, 256], sizes = [8, 128], strides = [1, 1]} : vector<8x512xf32> to vector<8x128xf32>
    %203 = math.tanh %202 : vector<8x128xf32>
    %204 = vector.extract_strided_slice %189 {offsets = [0, 384], sizes = [8, 128], strides = [1, 1]} : vector<8x512xf32> to vector<8x128xf32>
    %205 = arith.negf %204 : vector<8x128xf32>
    %206 = math.exp %205 : vector<8x128xf32>
    %cst_128 = arith.constant 1.000000e+00 : f32
    %207 = vector.broadcast %cst_128 : f32 to vector<8x128xf32>
    %208 = arith.addf %207, %206 : vector<8x128xf32>
    %209 = arith.divf %207, %208 : vector<8x128xf32>
    %210 = arith.mulf %201, %182 : vector<8x128xf32>
    %211 = arith.mulf %195, %203 : vector<8x128xf32>
    %212 = arith.addf %210, %211 : vector<8x128xf32>
    %213 = math.tanh %212 : vector<8x128xf32>
    %214 = arith.mulf %209, %213 : vector<8x128xf32>
    %c24_129 = arith.constant 24 : index
    %c0_130 = arith.constant 0 : index
    %215 = vector.load %arg18[%c24_129, %c0_130] : memref<64x512xf32, #tpu.memory_space<vmem>>, vector<8x512xf32>
    %216 = vector.extract_strided_slice %214 {offsets = [0, 0], sizes = [8, 32], strides = [1, 1]} : vector<8x128xf32> to vector<8x32xf32>
    %c0_131 = arith.constant 0 : index
    %c0_132 = arith.constant 0 : index
    %217 = vector.load %arg7[%c0_131, %c0_132] : memref<32x512xf32, #tpu.memory_space<vmem>>, vector<32x512xf32>
    %cst_133 = arith.constant dense<0.000000e+00> : vector<8x512xf32>
    %218 = tpu.matmul %216, %217, %cst_133 {dimension_numbers = #tpu.dot_dimension_numbers<[1], [0], [0], [1], [0, 0, 1, 1], [], []>} : vector<8x32xf32>, vector<32x512xf32>, vector<8x512xf32> -> vector<8x512xf32>
    %219 = arith.addf %215, %218 : vector<8x512xf32>
    %220 = vector.extract_strided_slice %219 {offsets = [0, 0], sizes = [8, 128], strides = [1, 1]} : vector<8x512xf32> to vector<8x128xf32>
    %221 = arith.negf %220 : vector<8x128xf32>
    %222 = math.exp %221 : vector<8x128xf32>
    %cst_134 = arith.constant 1.000000e+00 : f32
    %223 = vector.broadcast %cst_134 : f32 to vector<8x128xf32>
    %224 = arith.addf %223, %222 : vector<8x128xf32>
    %225 = arith.divf %223, %224 : vector<8x128xf32>
    %226 = vector.extract_strided_slice %219 {offsets = [0, 128], sizes = [8, 128], strides = [1, 1]} : vector<8x512xf32> to vector<8x128xf32>
    %227 = arith.negf %226 : vector<8x128xf32>
    %228 = math.exp %227 : vector<8x128xf32>
    %cst_135 = arith.constant 1.000000e+00 : f32
    %229 = vector.broadcast %cst_135 : f32 to vector<8x128xf32>
    %230 = arith.addf %229, %228 : vector<8x128xf32>
    %231 = arith.divf %229, %230 : vector<8x128xf32>
    %232 = vector.extract_strided_slice %219 {offsets = [0, 256], sizes = [8, 128], strides = [1, 1]} : vector<8x512xf32> to vector<8x128xf32>
    %233 = math.tanh %232 : vector<8x128xf32>
    %234 = vector.extract_strided_slice %219 {offsets = [0, 384], sizes = [8, 128], strides = [1, 1]} : vector<8x512xf32> to vector<8x128xf32>
    %235 = arith.negf %234 : vector<8x128xf32>
    %236 = math.exp %235 : vector<8x128xf32>
    %cst_136 = arith.constant 1.000000e+00 : f32
    %237 = vector.broadcast %cst_136 : f32 to vector<8x128xf32>
    %238 = arith.addf %237, %236 : vector<8x128xf32>
    %239 = arith.divf %237, %238 : vector<8x128xf32>
    %240 = arith.mulf %231, %212 : vector<8x128xf32>
    %241 = arith.mulf %225, %233 : vector<8x128xf32>
    %242 = arith.addf %240, %241 : vector<8x128xf32>
    %243 = math.tanh %242 : vector<8x128xf32>
    %244 = arith.mulf %239, %243 : vector<8x128xf32>
    %c16_137 = arith.constant 16 : index
    %c0_138 = arith.constant 0 : index
    %245 = vector.load %arg18[%c16_137, %c0_138] : memref<64x512xf32, #tpu.memory_space<vmem>>, vector<8x512xf32>
    %246 = vector.extract_strided_slice %244 {offsets = [0, 0], sizes = [8, 32], strides = [1, 1]} : vector<8x128xf32> to vector<8x32xf32>
    %c0_139 = arith.constant 0 : index
    %c0_140 = arith.constant 0 : index
    %247 = vector.load %arg7[%c0_139, %c0_140] : memref<32x512xf32, #tpu.memory_space<vmem>>, vector<32x512xf32>
    %cst_141 = arith.constant dense<0.000000e+00> : vector<8x512xf32>
    %248 = tpu.matmul %246, %247, %cst_141 {dimension_numbers = #tpu.dot_dimension_numbers<[1], [0], [0], [1], [0, 0, 1, 1], [], []>} : vector<8x32xf32>, vector<32x512xf32>, vector<8x512xf32> -> vector<8x512xf32>
    %249 = arith.addf %245, %248 : vector<8x512xf32>
    %250 = vector.extract_strided_slice %249 {offsets = [0, 0], sizes = [8, 128], strides = [1, 1]} : vector<8x512xf32> to vector<8x128xf32>
    %251 = arith.negf %250 : vector<8x128xf32>
    %252 = math.exp %251 : vector<8x128xf32>
    %cst_142 = arith.constant 1.000000e+00 : f32
    %253 = vector.broadcast %cst_142 : f32 to vector<8x128xf32>
    %254 = arith.addf %253, %252 : vector<8x128xf32>
    %255 = arith.divf %253, %254 : vector<8x128xf32>
    %256 = vector.extract_strided_slice %249 {offsets = [0, 128], sizes = [8, 128], strides = [1, 1]} : vector<8x512xf32> to vector<8x128xf32>
    %257 = arith.negf %256 : vector<8x128xf32>
    %258 = math.exp %257 : vector<8x128xf32>
    %cst_143 = arith.constant 1.000000e+00 : f32
    %259 = vector.broadcast %cst_143 : f32 to vector<8x128xf32>
    %260 = arith.addf %259, %258 : vector<8x128xf32>
    %261 = arith.divf %259, %260 : vector<8x128xf32>
    %262 = vector.extract_strided_slice %249 {offsets = [0, 256], sizes = [8, 128], strides = [1, 1]} : vector<8x512xf32> to vector<8x128xf32>
    %263 = math.tanh %262 : vector<8x128xf32>
    %264 = vector.extract_strided_slice %249 {offsets = [0, 384], sizes = [8, 128], strides = [1, 1]} : vector<8x512xf32> to vector<8x128xf32>
    %265 = arith.negf %264 : vector<8x128xf32>
    %266 = math.exp %265 : vector<8x128xf32>
    %cst_144 = arith.constant 1.000000e+00 : f32
    %267 = vector.broadcast %cst_144 : f32 to vector<8x128xf32>
    %268 = arith.addf %267, %266 : vector<8x128xf32>
    %269 = arith.divf %267, %268 : vector<8x128xf32>
    %270 = arith.mulf %261, %242 : vector<8x128xf32>
    %271 = arith.mulf %255, %263 : vector<8x128xf32>
    %272 = arith.addf %270, %271 : vector<8x128xf32>
    %273 = math.tanh %272 : vector<8x128xf32>
    %274 = arith.mulf %269, %273 : vector<8x128xf32>
    %c8_145 = arith.constant 8 : index
    %c0_146 = arith.constant 0 : index
    %275 = vector.load %arg18[%c8_145, %c0_146] : memref<64x512xf32, #tpu.memory_space<vmem>>, vector<8x512xf32>
    %276 = vector.extract_strided_slice %274 {offsets = [0, 0], sizes = [8, 32], strides = [1, 1]} : vector<8x128xf32> to vector<8x32xf32>
    %c0_147 = arith.constant 0 : index
    %c0_148 = arith.constant 0 : index
    %277 = vector.load %arg7[%c0_147, %c0_148] : memref<32x512xf32, #tpu.memory_space<vmem>>, vector<32x512xf32>
    %cst_149 = arith.constant dense<0.000000e+00> : vector<8x512xf32>
    %278 = tpu.matmul %276, %277, %cst_149 {dimension_numbers = #tpu.dot_dimension_numbers<[1], [0], [0], [1], [0, 0, 1, 1], [], []>} : vector<8x32xf32>, vector<32x512xf32>, vector<8x512xf32> -> vector<8x512xf32>
    %279 = arith.addf %275, %278 : vector<8x512xf32>
    %280 = vector.extract_strided_slice %279 {offsets = [0, 0], sizes = [8, 128], strides = [1, 1]} : vector<8x512xf32> to vector<8x128xf32>
    %281 = arith.negf %280 : vector<8x128xf32>
    %282 = math.exp %281 : vector<8x128xf32>
    %cst_150 = arith.constant 1.000000e+00 : f32
    %283 = vector.broadcast %cst_150 : f32 to vector<8x128xf32>
    %284 = arith.addf %283, %282 : vector<8x128xf32>
    %285 = arith.divf %283, %284 : vector<8x128xf32>
    %286 = vector.extract_strided_slice %279 {offsets = [0, 128], sizes = [8, 128], strides = [1, 1]} : vector<8x512xf32> to vector<8x128xf32>
    %287 = arith.negf %286 : vector<8x128xf32>
    %288 = math.exp %287 : vector<8x128xf32>
    %cst_151 = arith.constant 1.000000e+00 : f32
    %289 = vector.broadcast %cst_151 : f32 to vector<8x128xf32>
    %290 = arith.addf %289, %288 : vector<8x128xf32>
    %291 = arith.divf %289, %290 : vector<8x128xf32>
    %292 = vector.extract_strided_slice %279 {offsets = [0, 256], sizes = [8, 128], strides = [1, 1]} : vector<8x512xf32> to vector<8x128xf32>
    %293 = math.tanh %292 : vector<8x128xf32>
    %294 = vector.extract_strided_slice %279 {offsets = [0, 384], sizes = [8, 128], strides = [1, 1]} : vector<8x512xf32> to vector<8x128xf32>
    %295 = arith.negf %294 : vector<8x128xf32>
    %296 = math.exp %295 : vector<8x128xf32>
    %cst_152 = arith.constant 1.000000e+00 : f32
    %297 = vector.broadcast %cst_152 : f32 to vector<8x128xf32>
    %298 = arith.addf %297, %296 : vector<8x128xf32>
    %299 = arith.divf %297, %298 : vector<8x128xf32>
    %300 = arith.mulf %291, %272 : vector<8x128xf32>
    %301 = arith.mulf %285, %293 : vector<8x128xf32>
    %302 = arith.addf %300, %301 : vector<8x128xf32>
    %303 = math.tanh %302 : vector<8x128xf32>
    %304 = arith.mulf %299, %303 : vector<8x128xf32>
    %c0_153 = arith.constant 0 : index
    %c0_154 = arith.constant 0 : index
    %305 = vector.load %arg18[%c0_153, %c0_154] : memref<64x512xf32, #tpu.memory_space<vmem>>, vector<8x512xf32>
    %306 = vector.extract_strided_slice %304 {offsets = [0, 0], sizes = [8, 32], strides = [1, 1]} : vector<8x128xf32> to vector<8x32xf32>
    %c0_155 = arith.constant 0 : index
    %c0_156 = arith.constant 0 : index
    %307 = vector.load %arg7[%c0_155, %c0_156] : memref<32x512xf32, #tpu.memory_space<vmem>>, vector<32x512xf32>
    %cst_157 = arith.constant dense<0.000000e+00> : vector<8x512xf32>
    %308 = tpu.matmul %306, %307, %cst_157 {dimension_numbers = #tpu.dot_dimension_numbers<[1], [0], [0], [1], [0, 0, 1, 1], [], []>} : vector<8x32xf32>, vector<32x512xf32>, vector<8x512xf32> -> vector<8x512xf32>
    %309 = arith.addf %305, %308 : vector<8x512xf32>
    %310 = vector.extract_strided_slice %309 {offsets = [0, 0], sizes = [8, 128], strides = [1, 1]} : vector<8x512xf32> to vector<8x128xf32>
    %311 = arith.negf %310 : vector<8x128xf32>
    %312 = math.exp %311 : vector<8x128xf32>
    %cst_158 = arith.constant 1.000000e+00 : f32
    %313 = vector.broadcast %cst_158 : f32 to vector<8x128xf32>
    %314 = arith.addf %313, %312 : vector<8x128xf32>
    %315 = arith.divf %313, %314 : vector<8x128xf32>
    %316 = vector.extract_strided_slice %309 {offsets = [0, 128], sizes = [8, 128], strides = [1, 1]} : vector<8x512xf32> to vector<8x128xf32>
    %317 = arith.negf %316 : vector<8x128xf32>
    %318 = math.exp %317 : vector<8x128xf32>
    %cst_159 = arith.constant 1.000000e+00 : f32
    %319 = vector.broadcast %cst_159 : f32 to vector<8x128xf32>
    %320 = arith.addf %319, %318 : vector<8x128xf32>
    %321 = arith.divf %319, %320 : vector<8x128xf32>
    %322 = vector.extract_strided_slice %309 {offsets = [0, 256], sizes = [8, 128], strides = [1, 1]} : vector<8x512xf32> to vector<8x128xf32>
    %323 = math.tanh %322 : vector<8x128xf32>
    %324 = vector.extract_strided_slice %309 {offsets = [0, 384], sizes = [8, 128], strides = [1, 1]} : vector<8x512xf32> to vector<8x128xf32>
    %325 = arith.negf %324 : vector<8x128xf32>
    %326 = math.exp %325 : vector<8x128xf32>
    %cst_160 = arith.constant 1.000000e+00 : f32
    %327 = vector.broadcast %cst_160 : f32 to vector<8x128xf32>
    %328 = arith.addf %327, %326 : vector<8x128xf32>
    %329 = arith.divf %327, %328 : vector<8x128xf32>
    %330 = arith.mulf %321, %302 : vector<8x128xf32>
    %331 = arith.mulf %315, %323 : vector<8x128xf32>
    %332 = arith.addf %330, %331 : vector<8x128xf32>
    %333 = math.tanh %332 : vector<8x128xf32>
    %334 = arith.mulf %329, %333 : vector<8x128xf32>
    %c0_161 = arith.constant 0 : index
    %c0_162 = arith.constant 0 : index
    %335 = vector.load %arg15[%c0_161, %c0_162] : memref<8x32xf32, #tpu.memory_space<vmem>>, vector<8x32xf32>
    %c0_163 = arith.constant 0 : index
    %c0_164 = arith.constant 0 : index
    %336 = vector.load %arg9[%c0_163, %c0_164] : memref<32x128xf32, #tpu.memory_space<vmem>>, vector<32x128xf32>
    %cst_165 = arith.constant dense<0.000000e+00> : vector<8x128xf32>
    %337 = tpu.matmul %335, %336, %cst_165 {dimension_numbers = #tpu.dot_dimension_numbers<[1], [0], [0], [1], [0, 0, 1, 1], [], []>} : vector<8x32xf32>, vector<32x128xf32>, vector<8x128xf32> -> vector<8x128xf32>
    %338 = vector.extract_strided_slice %334 {offsets = [0, 0], sizes = [8, 32], strides = [1, 1]} : vector<8x128xf32> to vector<8x32xf32>
    %c0_166 = arith.constant 0 : index
    %c0_167 = arith.constant 0 : index
    %339 = vector.load %arg10[%c0_166, %c0_167] : memref<32x128xf32, #tpu.memory_space<vmem>>, vector<32x128xf32>
    %cst_168 = arith.constant dense<0.000000e+00> : vector<8x128xf32>
    %340 = tpu.matmul %338, %339, %cst_168 {dimension_numbers = #tpu.dot_dimension_numbers<[1], [0], [0], [1], [0, 0, 1, 1], [], []>} : vector<8x32xf32>, vector<32x128xf32>, vector<8x128xf32> -> vector<8x128xf32>
    %341 = arith.addf %337, %340 : vector<8x128xf32>
    %c0_169 = arith.constant 0 : index
    %c0_170 = arith.constant 0 : index
    %342 = vector.load %arg16[%c0_169, %c0_170] : memref<8x32xf32, #tpu.memory_space<vmem>>, vector<8x32xf32>
    %c0_171 = arith.constant 0 : index
    %c0_172 = arith.constant 0 : index
    %343 = vector.load %arg11[%c0_171, %c0_172] : memref<32x128xf32, #tpu.memory_space<vmem>>, vector<32x128xf32>
    %cst_173 = arith.constant dense<0.000000e+00> : vector<8x128xf32>
    %344 = tpu.matmul %342, %343, %cst_173 {dimension_numbers = #tpu.dot_dimension_numbers<[1], [0], [0], [1], [0, 0, 1, 1], [], []>} : vector<8x32xf32>, vector<32x128xf32>, vector<8x128xf32> -> vector<8x128xf32>
    %345 = arith.addf %341, %344 : vector<8x128xf32>
    %c0_174 = arith.constant 0 : index
    %c0_175 = arith.constant 0 : index
    %346 = vector.load %arg12[%c0_174, %c0_175] : memref<1x128xf32, #tpu.memory_space<vmem>>, vector<1x128xf32>
    %347 = vector.broadcast %346 : vector<1x128xf32> to vector<8x128xf32>
    %348 = arith.addf %345, %347 : vector<8x128xf32>
    %cst_176 = arith.constant 0.000000e+00 : f32
    %349 = vector.broadcast %cst_176 : f32 to vector<8x128xf32>
    %350 = arith.maximumf %348, %349 : vector<8x128xf32>
    %c0_177 = arith.constant 0 : index
    %c0_178 = arith.constant 0 : index
    %351 = vector.load %arg13[%c0_177, %c0_178] : memref<1x128xf32, #tpu.memory_space<vmem>>, vector<1x128xf32>
    %352 = vector.broadcast %351 : vector<1x128xf32> to vector<8x128xf32>
    %353 = arith.mulf %350, %352 : vector<8x128xf32>
    %cst_179 = arith.constant dense<0.000000e+00> : vector<8xf32>
    %354 = vector.multi_reduction <add>, %353, %cst_179 [1] : vector<8x128xf32> to vector<8xf32>
    %355 = vector.shape_cast %354 : vector<8xf32> to vector<8x1xf32>
    %c0_180 = arith.constant 0 : index
    %c0_181 = arith.constant 0 : index
    %356 = memref.load %arg3[%c0_180, %c0_181] : memref<1x1xf32, #tpu.memory_space<smem>>
    %357 = vector.broadcast %356 : f32 to vector<8x1xf32>
    %358 = arith.addf %355, %357 : vector<8x1xf32>
    %359 = arith.negf %358 : vector<8x1xf32>
    %360 = math.exp %359 : vector<8x1xf32>
    %cst_182 = arith.constant 1.000000e+00 : f32
    %361 = vector.broadcast %cst_182 : f32 to vector<8x1xf32>
    %362 = arith.addf %361, %360 : vector<8x1xf32>
    %363 = arith.divf %361, %362 : vector<8x1xf32>
    %364 = vector.shape_cast %363 : vector<8x1xf32> to vector<8x1xf32>
    %365 = vector.broadcast %364 : vector<8x1xf32> to vector<8x128xf32>
    %c0_183 = arith.constant 0 : index
    %c0_184 = arith.constant 0 : index
    %366 = vector.load %arg14[%c0_183, %c0_184] : memref<8x128xf32, #tpu.memory_space<vmem>>, vector<8x128xf32>
    tpu.vector_store %arg14[%c0_183, %c0_184], %365 {strides = array<i32>} : memref<8x128xf32, #tpu.memory_space<vmem>>, vector<8x128xf32>,
    return
  }
}

</mosaic_0001>

<llo_original>
// kernel: _forward_impl.1
$region0: #{_forward_impl.1}
  #allocation0 [shape = 'u32[]', space=smem, size = 0x4, offset = 0x4, fixed_abs, tag = 'smem constant byte address 0x4 - core index']
  #allocation1 [shape = 'u32[72,128]{1,0:T(1,128)}', space=vmem, size = 0x9000, scoped, tag = 'internal scratch']
  #allocation2 [shape = 'f32[8,32]{1,0:T(8,128)}', space=vmem, size = 0x1000, scoped, tag = 'scratch operand']
  #allocation3 [shape = 'f32[8,32]{1,0:T(8,128)}', space=vmem, size = 0x1000, scoped, tag = 'scratch operand']
  #allocation4 [shape = 'f32[64,32]{1,0:T(8,128)}', space=vmem, size = 0x8000, scoped, tag = 'scratch operand']
  #allocation5 [shape = 'f32[64,512]{1,0:T(8,128)}', space=vmem, size = 0x20000, scoped, tag = 'scratch operand']
  #allocation6 [shape = 'f32[1,1]{1,0:T(1,128)S(6)}', space=smem, size = 0x200, scoped, tag = 'scoped memory for _forward_impl.1']
  %s0 = inlined_call_operand.vmem [shape: s32[2,1], index: 0, kind: input, shape index: {}]
  %s1 = inlined_call_operand.vmem [shape: s32[2,8], index: 1, kind: input, shape index: {}]
  %s2 = inlined_call_operand.vmem [shape: s32[2,1], index: 2, kind: input, shape index: {}]
  %s3 = inlined_call_operand.<no memory space> [shape: f32[1,1], index: 3, kind: input, shape index: {}]
  %s4 = inlined_call_operand.vmem [shape: f32[50,32], index: 4, kind: input, shape index: {}]
  %s5 = inlined_call_operand.vmem [shape: f32[20,32], index: 5, kind: input, shape index: {}]
  %s6 = inlined_call_operand.hbm [shape: f32[32,512], index: 6, kind: input, shape index: {}]
  %s7 = inlined_call_operand.hbm [shape: f32[32,512], index: 7, kind: input, shape index: {}]
  %s8 = inlined_call_operand.vmem [shape: f32[1,512], index: 8, kind: input, shape index: {}]
  %s9 = inlined_call_operand.vmem [shape: f32[32,128], index: 9, kind: input, shape index: {}]
  %s10 = inlined_call_operand.vmem [shape: f32[32,128], index: 10, kind: input, shape index: {}]
  %s11 = inlined_call_operand.hbm [shape: f32[32,128], index: 11, kind: input, shape index: {}]
  %s12 = inlined_call_operand.hbm [shape: f32[1,128], index: 12, kind: input, shape index: {}]
  %s13 = inlined_call_operand.vmem [shape: f32[1,128], index: 13, kind: input, shape index: {}]
  %s14 = inlined_call_operand.vmem [shape: f32[8,128], index: 14, kind: output, shape index: {}]
  %s15 = sld [smem:[#allocation0]]
  $region94: #{_forward_impl.1} parent=0
    _
  %s17 = ssub.s32 1, %s15
  %s18 = scalar_select 0, %s17, %s15
  %19 = sst [smem:[#allocation6]] %s3
  $region1: #{_forward_impl.1} parent=0
    #allocation7 [shape = 'u8[1024]{0}', space=smem, size = 0x400, scoped, tag = 'input window, operand 0, single buffered']
    #allocation8 [shape = 's32[1]{0}', space=sflag, size = 0x4, scoped, tag = 'scoped memory for _forward_impl.1']
    #allocation9 [shape = 's32[1]{0}', space=sflag, size = 0x4, scoped, tag = 'scoped memory for _forward_impl.1']
    #allocation10 [shape = 'u8[1024]{0}', space=smem, size = 0x400, scoped, tag = 'input window, operand 1, single buffered']
    #allocation11 [shape = 's32[1]{0}', space=sflag, size = 0x4, scoped, tag = 'scoped memory for _forward_impl.1']
    #allocation12 [shape = 'u8[1024]{0}', space=smem, size = 0x400, scoped, tag = 'input window, operand 2, single buffered']
    #allocation13 [shape = 'u8[65536]{0}', space=vmem, size = 0x10000, scoped, tag = 'input window, operand 6, single buffered']
    #allocation14 [shape = 'u8[65536]{0}', space=vmem, size = 0x10000, scoped, tag = 'input window, operand 7, single buffered']
    #allocation15 [shape = 's32[1]{0}', space=sflag, size = 0x4, scoped, tag = 'scoped memory for _forward_impl.1']
    #allocation16 [shape = 'u8[16384]{0}', space=vmem, size = 0x4000, scoped, tag = 'input window, operand 11, single buffered']
    #allocation17 [shape = 'u8[512]{0}', space=vmem, size = 0x400, scoped, tag = 'input window, operand 12, single buffered']
    #allocation18 [shape = 's32[1]{0}', space=sflag, size = 0x4, scoped, tag = 'scoped memory for _forward_impl.1']
    %20 = vsyncpa [#allocation9], 0
    %21 = vsyncpa [#allocation11], 0
    %22 = vsyncpa [#allocation8], 0
    %23 = vsyncpa [#allocation15], 0
    %24 = vsyncpa [#allocation18], 0
    // Predicated region
    $region2: #{_forward_impl.1} parent=1 // pred_check
      _
    $region3: #{_forward_impl.1} parent=1 // pred_check_branch
      %26 = sbr.rel (0) target = $region5
    $region4: #{_forward_impl.1} parent=1 // pred_region
      %28 = vsyncadd [#allocation9], 0
      %s30 = sshll.u32 %s0, 4
      %s31 = int_to_ptr.vmem [resolvable:$true] %s30
      %33 = dma.vmem_to_smem %s31, 32, [#allocation7], [#allocation9]
    $region5: #{_forward_impl.1} parent=1 // pred_fallthru
      _
    // Predicated region
    $region6: #{_forward_impl.1} parent=1 // pred_check
      _
    $region7: #{_forward_impl.1} parent=1 // pred_check_branch
      %35 = sbr.rel (0) target = $region9
    $region8: #{_forward_impl.1} parent=1 // pred_region
      %37 = vsyncadd [#allocation11], 0
      %s39 = sshll.u32 %s1, 4
      %s40 = int_to_ptr.vmem [resolvable:$true] %s39
      %42 = dma.vmem_to_smem %s40, 32, [#allocation10], [#allocation11]
    $region9: #{_forward_impl.1} parent=1 // pred_fallthru
      _
    // Predicated region
    $region10: #{_forward_impl.1} parent=1 // pred_check
      _
    $region11: #{_forward_impl.1} parent=1 // pred_check_branch
      %44 = sbr.rel (0) target = $region13
    $region12: #{_forward_impl.1} parent=1 // pred_region
      %46 = vsyncadd [#allocation11], 0
      %s48 = sshll.u32 %s2, 4
      %s49 = int_to_ptr.vmem [resolvable:$true] %s48
      %51 = dma.vmem_to_smem %s49, 32, [#allocation12], [#allocation11]
    $region13: #{_forward_impl.1} parent=1 // pred_fallthru
      _
    // Predicated region
    $region14: #{_forward_impl.1} parent=1 // pred_check
      _
    $region15: #{_forward_impl.1} parent=1 // pred_check_branch
      %53 = sbr.rel (0) target = $region17
    $region16: #{_forward_impl.1} parent=1 // pred_region
      _
    $region17: #{_forward_impl.1} parent=1 // pred_fallthru
      _
    // Predicated region
    $region18: #{_forward_impl.1} parent=1 // pred_check
      _
    $region19: #{_forward_impl.1} parent=1 // pred_check_branch
      %55 = sbr.rel (0) target = $region21
    $region20: #{_forward_impl.1} parent=1 // pred_region
      _
    $region21: #{_forward_impl.1} parent=1 // pred_fallthru
      _
    // Predicated region
    $region22: #{_forward_impl.1} parent=1 // pred_check
      _
    $region23: #{_forward_impl.1} parent=1 // pred_check_branch
      %57 = sbr.rel (0) target = $region25
    $region24: #{_forward_impl.1} parent=1 // pred_region
      _
    $region25: #{_forward_impl.1} parent=1 // pred_fallthru
      _
    // Predicated region
    $region26: #{_forward_impl.1} parent=1 // pred_check
      _
    $region27: #{_forward_impl.1} parent=1 // pred_check_branch
      %59 = sbr.rel (0) target = $region29
    $region28: #{_forward_impl.1} parent=1 // pred_region
      %61 = vsyncadd [#allocation8], 0
      %s62 = sshll.u32 %s6, 4
      %s63 = int_to_ptr.hbm [resolvable:$true] %s62
      %s64 = sshll.u32 [#allocation13], 4
      %s65 = int_to_ptr.vmem [resolvable:$true] %s64
      %70 = dma.hbm_to_vmem [thread:$0]  %s63, 2048, %s65, [#allocation8], 512, 512, 32
    $region29: #{_forward_impl.1} parent=1 // pred_fallthru
      _
    // Predicated region
    $region30: #{_forward_impl.1} parent=1 // pred_check
      _
    $region31: #{_forward_impl.1} parent=1 // pred_check_branch
      %72 = sbr.rel (0) target = $region33
    $region32: #{_forward_impl.1} parent=1 // pred_region
      %74 = vsyncadd [#allocation15], 0
      %s75 = sshll.u32 %s7, 4
      %s76 = int_to_ptr.hbm [resolvable:$true] %s75
      %s77 = sshll.u32 [#allocation14], 4
      %s78 = int_to_ptr.vmem [resolvable:$true] %s77
      %83 = dma.hbm_to_vmem [thread:$0]  %s76, 2048, %s78, [#allocation15], 512, 512, 32
    $region33: #{_forward_impl.1} parent=1 // pred_fallthru
      _
    // Predicated region
    $region34: #{_forward_impl.1} parent=1 // pred_check
      _
    $region35: #{_forward_impl.1} parent=1 // pred_check_branch
      %85 = sbr.rel (0) target = $region37
    $region36: #{_forward_impl.1} parent=1 // pred_region
      _
    $region37: #{_forward_impl.1} parent=1 // pred_fallthru
      _
    // Predicated region
    $region38: #{_forward_impl.1} parent=1 // pred_check
      _
    $region39: #{_forward_impl.1} parent=1 // pred_check_branch
      %87 = sbr.rel (0) target = $region41
    $region40: #{_forward_impl.1} parent=1 // pred_region
      _
    $region41: #{_forward_impl.1} parent=1 // pred_fallthru
      _
    // Predicated region
    $region42: #{_forward_impl.1} parent=1 // pred_check
      _
    $region43: #{_forward_impl.1} parent=1 // pred_check_branch
      %89 = sbr.rel (0) target = $region45
    $region44: #{_forward_impl.1} parent=1 // pred_region
      _
    $region45: #{_forward_impl.1} parent=1 // pred_fallthru
      _
    // Predicated region
    $region46: #{_forward_impl.1} parent=1 // pred_check
      _
    $region47: #{_forward_impl.1} parent=1 // pred_check_branch
      %91 = sbr.rel (0) target = $region49
    $region48: #{_forward_impl.1} parent=1 // pred_region
      %93 = vsyncadd [#allocation15], 0
      %s94 = sshll.u32 %s11, 4
      %s95 = int_to_ptr.hbm [resolvable:$true] %s94
      %s96 = sshll.u32 [#allocation16], 4
      %s97 = int_to_ptr.vmem [resolvable:$true] %s96
      %102 = dma.hbm_to_vmem [thread:$0]  %s95, 512, %s97, [#allocation15], 128, 128, 8
    $region49: #{_forward_impl.1} parent=1 // pred_fallthru
      _
    // Predicated region
    $region50: #{_forward_impl.1} parent=1 // pred_check
      _
    $region51: #{_forward_impl.1} parent=1 // pred_check_branch
      %104 = sbr.rel (0) target = $region53
    $region52: #{_forward_impl.1} parent=1 // pred_region
      %106 = vsyncadd [#allocation18], 0
      %s108 = sshll.u32 %s12, 4
      %s109 = int_to_ptr.hbm [resolvable:$true] %s108
      %s110 = sshll.u32 [#allocation17], 4
      %s111 = int_to_ptr.vmem [resolvable:$true] %s110
      %113 = dma.hbm_to_vmem [thread:$0]  %s109, 16, %s111, [#allocation18]
    $region53: #{_forward_impl.1} parent=1 // pred_fallthru
      _
    // Predicated region
    $region54: #{_forward_impl.1} parent=1 // pred_check
      _
    $region55: #{_forward_impl.1} parent=1 // pred_check_branch
      %115 = sbr.rel (0) target = $region57
    $region56: #{_forward_impl.1} parent=1 // pred_region
      _
    $region57: #{_forward_impl.1} parent=1 // pred_fallthru
      _
    // Predicated region
    $region58: #{_forward_impl.1} parent=1 // pred_check
      _
    $region59: #{_forward_impl.1} parent=1 // pred_check_branch
      %117 = sbr.rel (0) target = $region61
    $region60: #{_forward_impl.1} parent=1 // pred_region
      %119 = dma.done [#allocation9], 32
    $region61: #{_forward_impl.1} parent=1 // pred_fallthru
      _
    // Predicated region
    $region62: #{_forward_impl.1} parent=1 // pred_check
      _
    $region63: #{_forward_impl.1} parent=1 // pred_check_branch
      %121 = sbr.rel (0) target = $region65
    $region64: #{_forward_impl.1} parent=1 // pred_region
      %123 = dma.done [#allocation11], 32
    $region65: #{_forward_impl.1} parent=1 // pred_fallthru
      _
    // Predicated region
    $region66: #{_forward_impl.1} parent=1 // pred_check
      _
    $region67: #{_forward_impl.1} parent=1 // pred_check_branch
      %125 = sbr.rel (0) target = $region69
    $region68: #{_forward_impl.1} parent=1 // pred_region
      %127 = dma.done [#allocation11], 32
    $region69: #{_forward_impl.1} parent=1 // pred_fallthru
      _
    // Predicated region
    $region70: #{_forward_impl.1} parent=1 // pred_check
      _
    $region71: #{_forward_impl.1} parent=1 // pred_check_branch
      %129 = sbr.rel (0) target = $region73
    $region72: #{_forward_impl.1} parent=1 // pred_region
      %131 = dma.done [#allocation8], 2048
    $region73: #{_forward_impl.1} parent=1 // pred_fallthru
      _
    // Predicated region
    $region74: #{_forward_impl.1} parent=1 // pred_check
      _
    $region75: #{_forward_impl.1} parent=1 // pred_check_branch
      %133 = sbr.rel (0) target = $region77
    $region76: #{_forward_impl.1} parent=1 // pred_region
      %135 = dma.done [#allocation15], 2048
    $region77: #{_forward_impl.1} parent=1 // pred_fallthru
      _
    // Predicated region
    $region78: #{_forward_impl.1} parent=1 // pred_check
      _
    $region79: #{_forward_impl.1} parent=1 // pred_check_branch
      %137 = sbr.rel (0) target = $region81
    $region80: #{_forward_impl.1} parent=1 // pred_region
      %139 = dma.done [#allocation15], 512
    $region81: #{_forward_impl.1} parent=1 // pred_fallthru
      _
    // Predicated region
    $region82: #{_forward_impl.1} parent=1 // pred_check
      _
    $region83: #{_forward_impl.1} parent=1 // pred_check_branch
      %141 = sbr.rel (0) target = $region85
    $region84: #{_forward_impl.1} parent=1 // pred_region
      %143 = dma.done [#allocation18], 16
    $region85: #{_forward_impl.1} parent=1 // pred_fallthru
      _
    %144 = sfence
    %vm145 = vcmask 261120
    %146 = vst.msk [vmem:[#allocation2] sm:$0xff] %vm145, 0.0
    %147 = vst.msk [vmem:[#allocation3] sm:$0xff] %vm145, 0.0
    %148 = vst.msk [vmem:[#allocation4] sm:$0xff] %vm145, 0.0
    %149 = vst.msk [vmem:[#allocation4 + $0x8] sm:$0xff] %vm145, 0.0
    %150 = vst.msk [vmem:[#allocation4 + $0x10] sm:$0xff] %vm145, 0.0
    %151 = vst.msk [vmem:[#allocation4 + $0x18] sm:$0xff] %vm145, 0.0
    %152 = vst.msk [vmem:[#allocation4 + $0x20] sm:$0xff] %vm145, 0.0
    %153 = vst.msk [vmem:[#allocation4 + $0x28] sm:$0xff] %vm145, 0.0
    %154 = vst.msk [vmem:[#allocation4 + $0x30] sm:$0xff] %vm145, 0.0
    %155 = vst.msk [vmem:[#allocation4 + $0x38] sm:$0xff] %vm145, 0.0
    %s156 = sld [smem:[#allocation7]]
    %s157 = scalar_lea.vmem %s4, %s156
    %v158 = vld [vmem:[%s157] sm:$0x1]
    %vm159 = vcmask 253952
    %160 = vst.msk [vmem:[#allocation2] sm:$0x1] %vm159, %v158
    %s161 = sld [smem:[#allocation12]]
    %s162 = scalar_lea.vmem %s4, %s161
    %v163 = vld [vmem:[%s162] sm:$0x1]
    %164 = vst.msk [vmem:[#allocation3] sm:$0x1] %vm159, %v163
    %s165 = sld [smem:[#allocation10]]
    %s166 = scalar_lea.vmem %s5, %s165
    %v167 = vld [vmem:[%s166] sm:$0x1]
    %168 = vst.msk [vmem:[#allocation4] sm:$0x1] %vm159, %v167
    %s169 = sld [smem:[#allocation10 + $0x1]]
    %s170 = scalar_lea.vmem %s5, %s169
    %v171 = vld [vmem:[%s170] sm:$0x1]
    %172 = vst.msk [vmem:[#allocation4 + $0x8] sm:$0x1] %vm159, %v171
    %s173 = sld [smem:[#allocation10 + $0x2]]
    %s174 = scalar_lea.vmem %s5, %s173
    %v175 = vld [vmem:[%s174] sm:$0x1]
    %176 = vst.msk [vmem:[#allocation4 + $0x10] sm:$0x1] %vm159, %v175
    %s177 = sld [smem:[#allocation10 + $0x3]]
    %s178 = scalar_lea.vmem %s5, %s177
    %v179 = vld [vmem:[%s178] sm:$0x1]
    %180 = vst.msk [vmem:[#allocation4 + $0x18] sm:$0x1] %vm159, %v179
    %s181 = sld [smem:[#allocation10 + $0x4]]
    %s182 = scalar_lea.vmem %s5, %s181
    %v183 = vld [vmem:[%s182] sm:$0x1]
    %184 = vst.msk [vmem:[#allocation4 + $0x20] sm:$0x1] %vm159, %v183
    %s185 = sld [smem:[#allocation10 + $0x5]]
    %s186 = scalar_lea.vmem %s5, %s185
    %v187 = vld [vmem:[%s186] sm:$0x1]
    %188 = vst.msk [vmem:[#allocation4 + $0x28] sm:$0x1] %vm159, %v187
    %s189 = sld [smem:[#allocation10 + $0x6]]
    %s190 = scalar_lea.vmem %s5, %s189
    %v191 = vld [vmem:[%s190] sm:$0x1]
    %192 = vst.msk [vmem:[#allocation4 + $0x30] sm:$0x1] %vm159, %v191
    %s193 = sld [smem:[#allocation10 + $0x7]]
    %s194 = scalar_lea.vmem %s5, %s193
    %v195 = vld [vmem:[%s194] sm:$0x1]
    %196 = vst.msk [vmem:[#allocation4 + $0x38] sm:$0x1] %vm159, %v195
    %s197 = sld [smem:[#allocation7 + $0x80]]
    %s198 = scalar_lea.vmem %s4, %s197
    %v199 = vld [vmem:[%s198] sm:$0x1]
    %200 = vst.msk [vmem:[#allocation2 + $0x1] sm:$0x1] %vm159, %v199
    %s201 = sld [smem:[#allocation12 + $0x80]]
    %s202 = scalar_lea.vmem %s4, %s201
    %v203 = vld [vmem:[%s202] sm:$0x1]
    %204 = vst.msk [vmem:[#allocation3 + $0x1] sm:$0x1] %vm159, %v203
    %s205 = sld [smem:[#allocation10 + $0x80]]
    %s206 = scalar_lea.vmem %s5, %s205
    %v207 = vld [vmem:[%s206] sm:$0x1]
    %208 = vst.msk [vmem:[#allocation4 + $0x1] sm:$0x1] %vm159, %v207
    %s209 = sld [smem:[#allocation10 + $0x81]]
    %s210 = scalar_lea.vmem %s5, %s209
    %v211 = vld [vmem:[%s210] sm:$0x1]
    %212 = vst.msk [vmem:[#allocation4 + $0x9] sm:$0x1] %vm159, %v211
    %s213 = sld [smem:[#allocation10 + $0x82]]
    %s214 = scalar_lea.vmem %s5, %s213
    %v215 = vld [vmem:[%s214] sm:$0x1]
    %216 = vst.msk [vmem:[#allocation4 + $0x11] sm:$0x1] %vm159, %v215
    %s217 = sld [smem:[#allocation10 + $0x83]]
    %s218 = scalar_lea.vmem %s5, %s217
    %v219 = vld [vmem:[%s218] sm:$0x1]
    %220 = vst.msk [vmem:[#allocation4 + $0x19] sm:$0x1] %vm159, %v219
    %s221 = sld [smem:[#allocation10 + $0x84]]
    %s222 = scalar_lea.vmem %s5, %s221
    %v223 = vld [vmem:[%s222] sm:$0x1]
    %224 = vst.msk [vmem:[#allocation4 + $0x21] sm:$0x1] %vm159, %v223
    %s225 = sld [smem:[#allocation10 + $0x85]]
    %s226 = scalar_lea.vmem %s5, %s225
    %v227 = vld [vmem:[%s226] sm:$0x1]
    %228 = vst.msk [vmem:[#allocation4 + $0x29] sm:$0x1] %vm159, %v227
    %s229 = sld [smem:[#allocation10 + $0x86]]
    %s230 = scalar_lea.vmem %s5, %s229
    %v231 = vld [vmem:[%s230] sm:$0x1]
    %232 = vst.msk [vmem:[#allocation4 + $0x31] sm:$0x1] %vm159, %v231
    %s233 = sld [smem:[#allocation10 + $0x87]]
    %s234 = scalar_lea.vmem %s5, %s233
    %v235 = vld [vmem:[%s234] sm:$0x1]
    %236 = vst.msk [vmem:[#allocation4 + $0x39] sm:$0x1] %vm159, %v235
    %v237 = vld [vmem:[#allocation4] sm:$0xff]
    %v238 = vld [vmem:[#allocation4 + $0x8] sm:$0xff]
    %v239 = vld [vmem:[#allocation4 + $0x10] sm:$0xff]
    %v240 = vld [vmem:[#allocation4 + $0x18] sm:$0xff]
    %v241 = vld [vmem:[#allocation4 + $0x20] sm:$0xff]
    %v242 = vld [vmem:[#allocation4 + $0x28] sm:$0xff]
    %v243 = vld [vmem:[#allocation4 + $0x30] sm:$0xff]
    %v244 = vld [vmem:[#allocation4 + $0x38] sm:$0xff]
    %v245 = vld [vmem:[#allocation13] sm:$0xff]
    %v246 = vld [vmem:[#allocation13 + $0x8] sm:$0xff]
    %v247 = vld [vmem:[#allocation13 + $0x10] sm:$0xff]
    %v248 = vld [vmem:[#allocation13 + $0x18] sm:$0xff]
    %v249 = vld [vmem:[#allocation13 + $0x20] sm:$0xff]
    %v250 = vld [vmem:[#allocation13 + $0x28] sm:$0xff]
    %v251 = vld [vmem:[#allocation13 + $0x30] sm:$0xff]
    %v252 = vld [vmem:[#allocation13 + $0x38] sm:$0xff]
    %v253 = vld [vmem:[#allocation13 + $0x40] sm:$0xff]
    %v254 = vld [vmem:[#allocation13 + $0x48] sm:$0xff]
    %v255 = vld [vmem:[#allocation13 + $0x50] sm:$0xff]
    %v256 = vld [vmem:[#allocation13 + $0x58] sm:$0xff]
    %v257 = vld [vmem:[#allocation13 + $0x60] sm:$0xff]
    %v258 = vld [vmem:[#allocation13 + $0x68] sm:$0xff]
    %v259 = vld [vmem:[#allocation13 + $0x70] sm:$0xff]
    %v260 = vld [vmem:[#allocation13 + $0x78] sm:$0xff]
    %v261 = vld [vmem:[%s8] sm:$0xf]
    %v263 = vperm.slane %v261, 0
    %v264 = vperm.slane %v261, 1
    %v265 = vperm.slane %v261, 2
    %v266 = vperm.slane %v261, 3
    %v272 = vsel %vm145, %v237, 0
    %v275 = vsel %vm145, %v238, 0
    %v278 = vsel %vm145, %v239, 0
    %v281 = vsel %vm145, %v240, 0
    %v284 = vsel %vm145, %v241, 0
    %v287 = vsel %vm145, %v242, 0
    %v290 = vsel %vm145, %v243, 0
    %v293 = vsel %vm145, %v244, 0
    %295 = vmatpush.msra.mxu0 0.0
    %296 = vmatpush.msra.mxu0 0.0
    %297 = vmatpush.msra.mxu0 0.0
    %298 = vmatpush.msra.mxu0 0.0
    %299 = vmatpush.msra.mxu0 0.0
    %300 = vmatpush.msra.mxu0 0.0
    %301 = vmatpush.msra.mxu0 0.0
    %302 = vmatpush.msra.mxu0 0.0
    %303 = vmatpush.msra.mxu0 0.0
    %304 = vmatpush.msra.mxu0 0.0
    %305 = vmatpush.msra.mxu0 0.0
    %306 = vmatpush.msra.mxu0 0.0
    %307 = vmatpush.msra.mxu0 %v257
    %308 = vmatpush.msra.mxu0 %v253
    %309 = vmatpush.msra.mxu0 %v249
    %310 = vmatpush.msra.mxu0 %v245
    %311 = vmatmul.f32.gmra.mxu0 %v272
    %v312 = vpop.f32.mrf.mxu0
    %v313 = vadd.f32 %v263, %v312
    %314 = vmatmul.f32.gmra.mxu0 %v275
    %v315 = vpop.f32.mrf.mxu0
    %v316 = vadd.f32 %v263, %v315
    %317 = vmatmul.f32.gmra.mxu0 %v278
    %v318 = vpop.f32.mrf.mxu0
    %v319 = vadd.f32 %v263, %v318
    %320 = vmatmul.f32.gmra.mxu0 %v281
    %v321 = vpop.f32.mrf.mxu0
    %v322 = vadd.f32 %v263, %v321
    %323 = vmatmul.f32.gmra.mxu0 %v284
    %v324 = vpop.f32.mrf.mxu0
    %v325 = vadd.f32 %v263, %v324
    %326 = vmatmul.f32.gmra.mxu0 %v287
    %v327 = vpop.f32.mrf.mxu0
    %v328 = vadd.f32 %v263, %v327
    %329 = vmatmul.f32.gmra.mxu0 %v290
    %v330 = vpop.f32.mrf.mxu0
    %v331 = vadd.f32 %v263, %v330
    %332 = vmatmul.f32.gmra.mxu0 %v293
    %v333 = vpop.f32.mrf.mxu0
    %v334 = vadd.f32 %v263, %v333
    %335 = vdwg.mxu0
    %336 = vmatpush.msra.mxu0 0.0
    %337 = vmatpush.msra.mxu0 0.0
    %338 = vmatpush.msra.mxu0 0.0
    %339 = vmatpush.msra.mxu0 0.0
    %340 = vmatpush.msra.mxu0 0.0
    %341 = vmatpush.msra.mxu0 0.0
    %342 = vmatpush.msra.mxu0 0.0
    %343 = vmatpush.msra.mxu0 0.0
    %344 = vmatpush.msra.mxu0 0.0
    %345 = vmatpush.msra.mxu0 0.0
    %346 = vmatpush.msra.mxu0 0.0
    %347 = vmatpush.msra.mxu0 0.0
    %348 = vmatpush.msra.mxu0 %v258
    %349 = vmatpush.msra.mxu0 %v254
    %350 = vmatpush.msra.mxu0 %v250
    %351 = vmatpush.msra.mxu0 %v246
    %352 = vmatmul.f32.gmra.mxu0 %v272
    %v353 = vpop.f32.mrf.mxu0
    %v354 = vadd.f32 %v264, %v353
    %355 = vmatmul.f32.gmra.mxu0 %v275
    %v356 = vpop.f32.mrf.mxu0
    %v357 = vadd.f32 %v264, %v356
    %358 = vmatmul.f32.gmra.mxu0 %v278
    %v359 = vpop.f32.mrf.mxu0
    %v360 = vadd.f32 %v264, %v359
    %361 = vmatmul.f32.gmra.mxu0 %v281
    %v362 = vpop.f32.mrf.mxu0
    %v363 = vadd.f32 %v264, %v362
    %364 = vmatmul.f32.gmra.mxu0 %v284
    %v365 = vpop.f32.mrf.mxu0
    %v366 = vadd.f32 %v264, %v365
    %367 = vmatmul.f32.gmra.mxu0 %v287
    %v368 = vpop.f32.mrf.mxu0
    %v369 = vadd.f32 %v264, %v368
    %370 = vmatmul.f32.gmra.mxu0 %v290
    %v371 = vpop.f32.mrf.mxu0
    %v372 = vadd.f32 %v264, %v371
    %373 = vmatmul.f32.gmra.mxu0 %v293
    %v374 = vpop.f32.mrf.mxu0
    %v375 = vadd.f32 %v264, %v374
    %376 = vdwg.mxu0
    %377 = vmatpush.msra.mxu0 0.0
    %378 = vmatpush.msra.mxu0 0.0
    %379 = vmatpush.msra.mxu0 0.0
    %380 = vmatpush.msra.mxu0 0.0
    %381 = vmatpush.msra.mxu0 0.0
    %382 = vmatpush.msra.mxu0 0.0
    %383 = vmatpush.msra.mxu0 0.0
    %384 = vmatpush.msra.mxu0 0.0
    %385 = vmatpush.msra.mxu0 0.0
    %386 = vmatpush.msra.mxu0 0.0
    %387 = vmatpush.msra.mxu0 0.0
    %388 = vmatpush.msra.mxu0 0.0
    %389 = vmatpush.msra.mxu0 %v259
    %390 = vmatpush.msra.mxu0 %v255
    %391 = vmatpush.msra.mxu0 %v251
    %392 = vmatpush.msra.mxu0 %v247
    %393 = vmatmul.f32.gmra.mxu0 %v272
    %v394 = vpop.f32.mrf.mxu0
    %v395 = vadd.f32 %v265, %v394
    %396 = vmatmul.f32.gmra.mxu0 %v275
    %v397 = vpop.f32.mrf.mxu0
    %v398 = vadd.f32 %v265, %v397
    %399 = vmatmul.f32.gmra.mxu0 %v278
    %v400 = vpop.f32.mrf.mxu0
    %v401 = vadd.f32 %v265, %v400
    %402 = vmatmul.f32.gmra.mxu0 %v281
    %v403 = vpop.f32.mrf.mxu0
    %v404 = vadd.f32 %v265, %v403
    %405 = vmatmul.f32.gmra.mxu0 %v284
    %v406 = vpop.f32.mrf.mxu0
    %v407 = vadd.f32 %v265, %v406
    %408 = vmatmul.f32.gmra.mxu0 %v287
    %v409 = vpop.f32.mrf.mxu0
    %v410 = vadd.f32 %v265, %v409
    %411 = vmatmul.f32.gmra.mxu0 %v290
    %v412 = vpop.f32.mrf.mxu0
    %v413 = vadd.f32 %v265, %v412
    %414 = vmatmul.f32.gmra.mxu0 %v293
    %v415 = vpop.f32.mrf.mxu0
    %v416 = vadd.f32 %v265, %v415
    %417 = vdwg.mxu0
    %418 = vmatpush.msra.mxu0 0.0
    %419 = vmatpush.msra.mxu0 0.0
    %420 = vmatpush.msra.mxu0 0.0
    %421 = vmatpush.msra.mxu0 0.0
    %422 = vmatpush.msra.mxu0 0.0
    %423 = vmatpush.msra.mxu0 0.0
    %424 = vmatpush.msra.mxu0 0.0
    %425 = vmatpush.msra.mxu0 0.0
    %426 = vmatpush.msra.mxu0 0.0
    %427 = vmatpush.msra.mxu0 0.0
    %428 = vmatpush.msra.mxu0 0.0
    %429 = vmatpush.msra.mxu0 0.0
    %430 = vmatpush.msra.mxu0 %v260
    %431 = vmatpush.msra.mxu0 %v256
    %432 = vmatpush.msra.mxu0 %v252
    %433 = vmatpush.msra.mxu0 %v248
    %434 = vmatmul.f32.gmra.mxu0 %v272
    %v435 = vpop.f32.mrf.mxu0
    %v436 = vadd.f32 %v266, %v435
    %437 = vmatmul.f32.gmra.mxu0 %v275
    %v438 = vpop.f32.mrf.mxu0
    %v439 = vadd.f32 %v266, %v438
    %440 = vmatmul.f32.gmra.mxu0 %v278
    %v441 = vpop.f32.mrf.mxu0
    %v442 = vadd.f32 %v266, %v441
    %443 = vmatmul.f32.gmra.mxu0 %v281
    %v444 = vpop.f32.mrf.mxu0
    %v445 = vadd.f32 %v266, %v444
    %446 = vmatmul.f32.gmra.mxu0 %v284
    %v447 = vpop.f32.mrf.mxu0
    %v448 = vadd.f32 %v266, %v447
    %449 = vmatmul.f32.gmra.mxu0 %v287
    %v450 = vpop.f32.mrf.mxu0
    %v451 = vadd.f32 %v266, %v450
    %452 = vmatmul.f32.gmra.mxu0 %v290
    %v453 = vpop.f32.mrf.mxu0
    %v454 = vadd.f32 %v266, %v453
    %455 = vmatmul.f32.gmra.mxu0 %v293
    %v456 = vpop.f32.mrf.mxu0
    %v457 = vadd.f32 %v266, %v456
    %458 = vdwg.mxu0
    %459 = vst [vmem:[#allocation5] sm:$0xff] %v313
    %460 = vst [vmem:[#allocation5 + $0x8] sm:$0xff] %v354
    %461 = vst [vmem:[#allocation5 + $0x10] sm:$0xff] %v395
    %462 = vst [vmem:[#allocation5 + $0x18] sm:$0xff] %v436
    %463 = vst [vmem:[#allocation5 + $0x20] sm:$0xff] %v316
    %464 = vst [vmem:[#allocation5 + $0x28] sm:$0xff] %v357
    %465 = vst [vmem:[#allocation5 + $0x30] sm:$0xff] %v398
    %466 = vst [vmem:[#allocation5 + $0x38] sm:$0xff] %v439
    %467 = vst [vmem:[#allocation5 + $0x40] sm:$0xff] %v319
    %468 = vst [vmem:[#allocation5 + $0x48] sm:$0xff] %v360
    %469 = vst [vmem:[#allocation5 + $0x50] sm:$0xff] %v401
    %470 = vst [vmem:[#allocation5 + $0x58] sm:$0xff] %v442
    %471 = vst [vmem:[#allocation5 + $0x60] sm:$0xff] %v322
    %472 = vst [vmem:[#allocation5 + $0x68] sm:$0xff] %v363
    %473 = vst [vmem:[#allocation5 + $0x70] sm:$0xff] %v404
    %474 = vst [vmem:[#allocation5 + $0x78] sm:$0xff] %v445
    %475 = vst [vmem:[#allocation5 + $0x80] sm:$0xff] %v325
    %476 = vst [vmem:[#allocation5 + $0x88] sm:$0xff] %v366
    %477 = vst [vmem:[#allocation5 + $0x90] sm:$0xff] %v407
    %478 = vst [vmem:[#allocation5 + $0x98] sm:$0xff] %v448
    %479 = vst [vmem:[#allocation5 + $0xa0] sm:$0xff] %v328
    %480 = vst [vmem:[#allocation5 + $0xa8] sm:$0xff] %v369
    %481 = vst [vmem:[#allocation5 + $0xb0] sm:$0xff] %v410
    %482 = vst [vmem:[#allocation5 + $0xb8] sm:$0xff] %v451
    %483 = vst [vmem:[#allocation5 + $0xc0] sm:$0xff] %v331
    %484 = vst [vmem:[#allocation5 + $0xc8] sm:$0xff] %v372
    %485 = vst [vmem:[#allocation5 + $0xd0] sm:$0xff] %v413
    %486 = vst [vmem:[#allocation5 + $0xd8] sm:$0xff] %v454
    %487 = vst [vmem:[#allocation5 + $0xe0] sm:$0xff] %v334
    %488 = vst [vmem:[#allocation5 + $0xe8] sm:$0xff] %v375
    %489 = vst [vmem:[#allocation5 + $0xf0] sm:$0xff] %v416
    %490 = vst [vmem:[#allocation5 + $0xf8] sm:$0xff] %v457
    %v491 = vld [vmem:[#allocation5 + $0xe0] sm:$0xff]
    %v492 = vld [vmem:[#allocation5 + $0xe8] sm:$0xff]
    %v493 = vld [vmem:[#allocation5 + $0xf0] sm:$0xff]
    %v494 = vld [vmem:[#allocation5 + $0xf8] sm:$0xff]
    %v495 = vld [vmem:[#allocation14] sm:$0xff]
    %v496 = vld [vmem:[#allocation14 + $0x8] sm:$0xff]
    %v497 = vld [vmem:[#allocation14 + $0x10] sm:$0xff]
    %v498 = vld [vmem:[#allocation14 + $0x18] sm:$0xff]
    %v499 = vld [vmem:[#allocation14 + $0x20] sm:$0xff]
    %v500 = vld [vmem:[#allocation14 + $0x28] sm:$0xff]
    %v501 = vld [vmem:[#allocation14 + $0x30] sm:$0xff]
    %v502 = vld [vmem:[#allocation14 + $0x38] sm:$0xff]
    %v503 = vld [vmem:[#allocation14 + $0x40] sm:$0xff]
    %v504 = vld [vmem:[#allocation14 + $0x48] sm:$0xff]
    %v505 = vld [vmem:[#allocation14 + $0x50] sm:$0xff]
    %v506 = vld [vmem:[#allocation14 + $0x58] sm:$0xff]
    %v507 = vld [vmem:[#allocation14 + $0x60] sm:$0xff]
    %v508 = vld [vmem:[#allocation14 + $0x68] sm:$0xff]
    %v509 = vld [vmem:[#allocation14 + $0x70] sm:$0xff]
    %v510 = vld [vmem:[#allocation14 + $0x78] sm:$0xff]
    %v512 = vsel %vm145, 0.0, 0
    %514 = vmatpush.msra.mxu0 0.0
    %515 = vmatpush.msra.mxu0 0.0
    %516 = vmatpush.msra.mxu0 0.0
    %517 = vmatpush.msra.mxu0 0.0
    %518 = vmatpush.msra.mxu0 0.0
    %519 = vmatpush.msra.mxu0 0.0
    %520 = vmatpush.msra.mxu0 0.0
    %521 = vmatpush.msra.mxu0 0.0
    %522 = vmatpush.msra.mxu0 0.0
    %523 = vmatpush.msra.mxu0 0.0
    %524 = vmatpush.msra.mxu0 0.0
    %525 = vmatpush.msra.mxu0 0.0
    %526 = vmatpush.msra.mxu0 %v507
    %527 = vmatpush.msra.mxu0 %v503
    %528 = vmatpush.msra.mxu0 %v499
    %529 = vmatpush.msra.mxu0 %v495
    %530 = vmatmul.f32.gmra.mxu0 %v512
    %v531 = vpop.f32.mrf.mxu0
    %v532 = vadd.f32 0.0, %v531
    %533 = vdwg.mxu0
    %534 = vmatpush.msra.mxu0 0.0
    %535 = vmatpush.msra.mxu0 0.0
    %536 = vmatpush.msra.mxu0 0.0
    %537 = vmatpush.msra.mxu0 0.0
    %538 = vmatpush.msra.mxu0 0.0
    %539 = vmatpush.msra.mxu0 0.0
    %540 = vmatpush.msra.mxu0 0.0
    %541 = vmatpush.msra.mxu0 0.0
    %542 = vmatpush.msra.mxu0 0.0
    %543 = vmatpush.msra.mxu0 0.0
    %544 = vmatpush.msra.mxu0 0.0
    %545 = vmatpush.msra.mxu0 0.0
    %546 = vmatpush.msra.mxu0 %v508
    %547 = vmatpush.msra.mxu0 %v504
    %548 = vmatpush.msra.mxu0 %v500
    %549 = vmatpush.msra.mxu0 %v496
    %550 = vmatmul.f32.gmra.mxu0 %v512
    %v551 = vpop.f32.mrf.mxu0
    %v552 = vadd.f32 0.0, %v551
    %553 = vdwg.mxu0
    %554 = vmatpush.msra.mxu0 0.0
    %555 = vmatpush.msra.mxu0 0.0
    %556 = vmatpush.msra.mxu0 0.0
    %557 = vmatpush.msra.mxu0 0.0
    %558 = vmatpush.msra.mxu0 0.0
    %559 = vmatpush.msra.mxu0 0.0
    %560 = vmatpush.msra.mxu0 0.0
    %561 = vmatpush.msra.mxu0 0.0
    %562 = vmatpush.msra.mxu0 0.0
    %563 = vmatpush.msra.mxu0 0.0
    %564 = vmatpush.msra.mxu0 0.0
    %565 = vmatpush.msra.mxu0 0.0
    %566 = vmatpush.msra.mxu0 %v509
    %567 = vmatpush.msra.mxu0 %v505
    %568 = vmatpush.msra.mxu0 %v501
    %569 = vmatpush.msra.mxu0 %v497
    %570 = vmatmul.f32.gmra.mxu0 %v512
    %v571 = vpop.f32.mrf.mxu0
    %v572 = vadd.f32 0.0, %v571
    %573 = vdwg.mxu0
    %574 = vmatpush.msra.mxu0 0.0
    %575 = vmatpush.msra.mxu0 0.0
    %576 = vmatpush.msra.mxu0 0.0
    %577 = vmatpush.msra.mxu0 0.0
    %578 = vmatpush.msra.mxu0 0.0
    %579 = vmatpush.msra.mxu0 0.0
    %580 = vmatpush.msra.mxu0 0.0
    %581 = vmatpush.msra.mxu0 0.0
    %582 = vmatpush.msra.mxu0 0.0
    %583 = vmatpush.msra.mxu0 0.0
    %584 = vmatpush.msra.mxu0 0.0
    %585 = vmatpush.msra.mxu0 0.0
    %586 = vmatpush.msra.mxu0 %v510
    %587 = vmatpush.msra.mxu0 %v506
    %588 = vmatpush.msra.mxu0 %v502
    %589 = vmatpush.msra.mxu0 %v498
    %590 = vmatmul.f32.gmra.mxu0 %v512
    %v591 = vpop.f32.mrf.mxu0
    %v592 = vadd.f32 0.0, %v591
    %593 = vdwg.mxu0
    %v594 = vadd.f32 %v491, %v532
    %v595 = vadd.f32 %v492, %v552
    %v596 = vadd.f32 %v493, %v572
    %v597 = vadd.f32 %v494, %v592
    %v598 = vxor.u32 %v594, 2147483648
    %v599 = vmul.f32 %v598, 1.442695
    %v600 = vpow.pop %v599
    %v601 = vadd.f32 %v600, 1.0
    %v602 = vrcp.pop %v601
    %v603 = vmul.f32 %v601, %v602
    %v604 = vsub.f32 1.0, %v603
    %v605 = vmul.f32 %v602, %v604
    %v606 = vadd.f32 %v602, %v605
    %vm607 = vweird.f32 %v601
    %vm608 = vweird.f32 %v602
    %vm609 = vmor %vm607, %vm608
    %v610 = vsel %vm609, %v602, %v606
    %v611 = vand.u32 2147483647, %v601
    %vm612 = vcmp.eq.f32.partialorder %v611, 8.507059e+37
    %v613 = vand.u32 %v601, 2147483648
    %v614 = vor.u32 1.1754944e-38, %v613
    %v615 = vsel %vm612, %v614, %v610
    %v616 = vmul.f32 1.0, %v615
    %v617 = vxor.u32 %v595, 2147483648
    %v618 = vmul.f32 %v617, 1.442695
    %v619 = vpow.pop %v618
    %v620 = vadd.f32 %v619, 1.0
    %v621 = vrcp.pop %v620
    %v622 = vmul.f32 %v620, %v621
    %v623 = vsub.f32 1.0, %v622
    %v624 = vmul.f32 %v621, %v623
    %v625 = vadd.f32 %v621, %v624
    %vm626 = vweird.f32 %v620
    %vm627 = vweird.f32 %v621
    %vm628 = vmor %vm626, %vm627
    %v629 = vsel %vm628, %v621, %v625
    %v630 = vand.u32 2147483647, %v620
    %vm631 = vcmp.eq.f32.partialorder %v630, 8.507059e+37
    %v632 = vand.u32 %v620, 2147483648
    %v633 = vor.u32 1.1754944e-38, %v632
    %v634 = vsel %vm631, %v633, %v629
    %v635 = vmul.f32 1.0, %v634
    %v636 = vtanh.pop %v596
    %v637 = vxor.u32 %v597, 2147483648
    %v638 = vmul.f32 %v637, 1.442695
    %v639 = vpow.pop %v638
    %v640 = vadd.f32 %v639, 1.0
    %v641 = vrcp.pop %v640
    %v642 = vmul.f32 %v640, %v641
    %v643 = vsub.f32 1.0, %v642
    %v644 = vmul.f32 %v641, %v643
    %v645 = vadd.f32 %v641, %v644
    %vm646 = vweird.f32 %v640
    %vm647 = vweird.f32 %v641
    %vm648 = vmor %vm646, %vm647
    %v649 = vsel %vm648, %v641, %v645
    %v650 = vand.u32 2147483647, %v640
    %vm651 = vcmp.eq.f32.partialorder %v650, 8.507059e+37
    %v652 = vand.u32 %v640, 2147483648
    %v653 = vor.u32 1.1754944e-38, %v652
    %v654 = vsel %vm651, %v653, %v649
    %v655 = vmul.f32 1.0, %v654
    %v656 = vmul.f32 %v635, 0.0
    %v657 = vmul.f32 %v616, %v636
    %v658 = vadd.f32 %v656, %v657
    %v659 = vtanh.pop %v658
    %v660 = vmul.f32 %v655, %v659
    %v661 = vld [vmem:[#allocation5 + $0xc0] sm:$0xff]
    %v662 = vld [vmem:[#allocation5 + $0xc8] sm:$0xff]
    %v663 = vld [vmem:[#allocation5 + $0xd0] sm:$0xff]
    %v664 = vld [vmem:[#allocation5 + $0xd8] sm:$0xff]
    %v666 = vsel %vm145, %v660, 0
    %668 = vmatpush.msra.mxu0 0.0
    %669 = vmatpush.msra.mxu0 0.0
    %670 = vmatpush.msra.mxu0 0.0
    %671 = vmatpush.msra.mxu0 0.0
    %672 = vmatpush.msra.mxu0 0.0
    %673 = vmatpush.msra.mxu0 0.0
    %674 = vmatpush.msra.mxu0 0.0
    %675 = vmatpush.msra.mxu0 0.0
    %676 = vmatpush.msra.mxu0 0.0
    %677 = vmatpush.msra.mxu0 0.0
    %678 = vmatpush.msra.mxu0 0.0
    %679 = vmatpush.msra.mxu0 0.0
    %680 = vmatpush.msra.mxu0 %v507
    %681 = vmatpush.msra.mxu0 %v503
    %682 = vmatpush.msra.mxu0 %v499
    %683 = vmatpush.msra.mxu0 %v495
    %684 = vmatmul.f32.gmra.mxu0 %v666
    %v685 = vpop.f32.mrf.mxu0
    %v686 = vadd.f32 0.0, %v685
    %687 = vdwg.mxu0
    %688 = vmatpush.msra.mxu0 0.0
    %689 = vmatpush.msra.mxu0 0.0
    %690 = vmatpush.msra.mxu0 0.0
    %691 = vmatpush.msra.mxu0 0.0
    %692 = vmatpush.msra.mxu0 0.0
    %693 = vmatpush.msra.mxu0 0.0
    %694 = vmatpush.msra.mxu0 0.0
    %695 = vmatpush.msra.mxu0 0.0
    %696 = vmatpush.msra.mxu0 0.0
    %697 = vmatpush.msra.mxu0 0.0
    %698 = vmatpush.msra.mxu0 0.0
    %699 = vmatpush.msra.mxu0 0.0
    %700 = vmatpush.msra.mxu0 %v508
    %701 = vmatpush.msra.mxu0 %v504
    %702 = vmatpush.msra.mxu0 %v500
    %703 = vmatpush.msra.mxu0 %v496
    %704 = vmatmul.f32.gmra.mxu0 %v666
    %v705 = vpop.f32.mrf.mxu0
    %v706 = vadd.f32 0.0, %v705
    %707 = vdwg.mxu0
    %708 = vmatpush.msra.mxu0 0.0
    %709 = vmatpush.msra.mxu0 0.0
    %710 = vmatpush.msra.mxu0 0.0
    %711 = vmatpush.msra.mxu0 0.0
    %712 = vmatpush.msra.mxu0 0.0
    %713 = vmatpush.msra.mxu0 0.0
    %714 = vmatpush.msra.mxu0 0.0
    %715 = vmatpush.msra.mxu0 0.0
    %716 = vmatpush.msra.mxu0 0.0
    %717 = vmatpush.msra.mxu0 0.0
    %718 = vmatpush.msra.mxu0 0.0
    %719 = vmatpush.msra.mxu0 0.0
    %720 = vmatpush.msra.mxu0 %v509
    %721 = vmatpush.msra.mxu0 %v505
    %722 = vmatpush.msra.mxu0 %v501
    %723 = vmatpush.msra.mxu0 %v497
    %724 = vmatmul.f32.gmra.mxu0 %v666
    %v725 = vpop.f32.mrf.mxu0
    %v726 = vadd.f32 0.0, %v725
    %727 = vdwg.mxu0
    %728 = vmatpush.msra.mxu0 0.0
    %729 = vmatpush.msra.mxu0 0.0
    %730 = vmatpush.msra.mxu0 0.0
    %731 = vmatpush.msra.mxu0 0.0
    %732 = vmatpush.msra.mxu0 0.0
    %733 = vmatpush.msra.mxu0 0.0
    %734 = vmatpush.msra.mxu0 0.0
    %735 = vmatpush.msra.mxu0 0.0
    %736 = vmatpush.msra.mxu0 0.0
    %737 = vmatpush.msra.mxu0 0.0
    %738 = vmatpush.msra.mxu0 0.0
    %739 = vmatpush.msra.mxu0 0.0
    %740 = vmatpush.msra.mxu0 %v510
    %741 = vmatpush.msra.mxu0 %v506
    %742 = vmatpush.msra.mxu0 %v502
    %743 = vmatpush.msra.mxu0 %v498
    %744 = vmatmul.f32.gmra.mxu0 %v666
    %v745 = vpop.f32.mrf.mxu0
    %v746 = vadd.f32 0.0, %v745
    %747 = vdwg.mxu0
    %v748 = vadd.f32 %v661, %v686
    %v749 = vadd.f32 %v662, %v706
    %v750 = vadd.f32 %v663, %v726
    %v751 = vadd.f32 %v664, %v746
    %v752 = vxor.u32 %v748, 2147483648
    %v753 = vmul.f32 %v752, 1.442695
    %v754 = vpow.pop %v753
    %v755 = vadd.f32 %v754, 1.0
    %v756 = vrcp.pop %v755
    %v757 = vmul.f32 %v755, %v756
    %v758 = vsub.f32 1.0, %v757
    %v759 = vmul.f32 %v756, %v758
    %v760 = vadd.f32 %v756, %v759
    %vm761 = vweird.f32 %v755
    %vm762 = vweird.f32 %v756
    %vm763 = vmor %vm761, %vm762
    %v764 = vsel %vm763, %v756, %v760
    %v765 = vand.u32 2147483647, %v755
    %vm766 = vcmp.eq.f32.partialorder %v765, 8.507059e+37
    %v767 = vand.u32 %v755, 2147483648
    %v768 = vor.u32 1.1754944e-38, %v767
    %v769 = vsel %vm766, %v768, %v764
    %v770 = vmul.f32 1.0, %v769
    %v771 = vxor.u32 %v749, 2147483648
    %v772 = vmul.f32 %v771, 1.442695
    %v773 = vpow.pop %v772
    %v774 = vadd.f32 %v773, 1.0
    %v775 = vrcp.pop %v774
    %v776 = vmul.f32 %v774, %v775
    %v777 = vsub.f32 1.0, %v776
    %v778 = vmul.f32 %v775, %v777
    %v779 = vadd.f32 %v775, %v778
    %vm780 = vweird.f32 %v774
    %vm781 = vweird.f32 %v775
    %vm782 = vmor %vm780, %vm781
    %v783 = vsel %vm782, %v775, %v779
    %v784 = vand.u32 2147483647, %v774
    %vm785 = vcmp.eq.f32.partialorder %v784, 8.507059e+37
    %v786 = vand.u32 %v774, 2147483648
    %v787 = vor.u32 1.1754944e-38, %v786
    %v788 = vsel %vm785, %v787, %v783
    %v789 = vmul.f32 1.0, %v788
    %v790 = vtanh.pop %v750
    %v791 = vxor.u32 %v751, 2147483648
    %v792 = vmul.f32 %v791, 1.442695
    %v793 = vpow.pop %v792
    %v794 = vadd.f32 %v793, 1.0
    %v795 = vrcp.pop %v794
    %v796 = vmul.f32 %v794, %v795
    %v797 = vsub.f32 1.0, %v796
    %v798 = vmul.f32 %v795, %v797
    %v799 = vadd.f32 %v795, %v798
    %vm800 = vweird.f32 %v794
    %vm801 = vweird.f32 %v795
    %vm802 = vmor %vm800, %vm801
    %v803 = vsel %vm802, %v795, %v799
    %v804 = vand.u32 2147483647, %v794
    %vm805 = vcmp.eq.f32.partialorder %v804, 8.507059e+37
    %v806 = vand.u32 %v794, 2147483648
    %v807 = vor.u32 1.1754944e-38, %v806
    %v808 = vsel %vm805, %v807, %v803
    %v809 = vmul.f32 1.0, %v808
    %v810 = vmul.f32 %v789, %v658
    %v811 = vmul.f32 %v770, %v790
    %v812 = vadd.f32 %v810, %v811
    %v813 = vtanh.pop %v812
    %v814 = vmul.f32 %v809, %v813
    %v815 = vld [vmem:[#allocation5 + $0xa0] sm:$0xff]
    %v816 = vld [vmem:[#allocation5 + $0xa8] sm:$0xff]
    %v817 = vld [vmem:[#allocation5 + $0xb0] sm:$0xff]
    %v818 = vld [vmem:[#allocation5 + $0xb8] sm:$0xff]
    %v820 = vsel %vm145, %v814, 0
    %822 = vmatpush.msra.mxu0 0.0
    %823 = vmatpush.msra.mxu0 0.0
    %824 = vmatpush.msra.mxu0 0.0
    %825 = vmatpush.msra.mxu0 0.0
    %826 = vmatpush.msra.mxu0 0.0
    %827 = vmatpush.msra.mxu0 0.0
    %828 = vmatpush.msra.mxu0 0.0
    %829 = vmatpush.msra.mxu0 0.0
    %830 = vmatpush.msra.mxu0 0.0
    %831 = vmatpush.msra.mxu0 0.0
    %832 = vmatpush.msra.mxu0 0.0
    %833 = vmatpush.msra.mxu0 0.0
    %834 = vmatpush.msra.mxu0 %v507
    %835 = vmatpush.msra.mxu0 %v503
    %836 = vmatpush.msra.mxu0 %v499
    %837 = vmatpush.msra.mxu0 %v495
    %838 = vmatmul.f32.gmra.mxu0 %v820
    %v839 = vpop.f32.mrf.mxu0
    %v840 = vadd.f32 0.0, %v839
    %841 = vdwg.mxu0
    %842 = vmatpush.msra.mxu0 0.0
    %843 = vmatpush.msra.mxu0 0.0
    %844 = vmatpush.msra.mxu0 0.0
    %845 = vmatpush.msra.mxu0 0.0
    %846 = vmatpush.msra.mxu0 0.0
    %847 = vmatpush.msra.mxu0 0.0
    %848 = vmatpush.msra.mxu0 0.0
    %849 = vmatpush.msra.mxu0 0.0
    %850 = vmatpush.msra.mxu0 0.0
    %851 = vmatpush.msra.mxu0 0.0
    %852 = vmatpush.msra.mxu0 0.0
    %853 = vmatpush.msra.mxu0 0.0
    %854 = vmatpush.msra.mxu0 %v508
    %855 = vmatpush.msra.mxu0 %v504
    %856 = vmatpush.msra.mxu0 %v500
    %857 = vmatpush.msra.mxu0 %v496
    %858 = vmatmul.f32.gmra.mxu0 %v820
    %v859 = vpop.f32.mrf.mxu0
    %v860 = vadd.f32 0.0, %v859
    %861 = vdwg.mxu0
    %862 = vmatpush.msra.mxu0 0.0
    %863 = vmatpush.msra.mxu0 0.0
    %864 = vmatpush.msra.mxu0 0.0
    %865 = vmatpush.msra.mxu0 0.0
    %866 = vmatpush.msra.mxu0 0.0
    %867 = vmatpush.msra.mxu0 0.0
    %868 = vmatpush.msra.mxu0 0.0
    %869 = vmatpush.msra.mxu0 0.0
    %870 = vmatpush.msra.mxu0 0.0
    %871 = vmatpush.msra.mxu0 0.0
    %872 = vmatpush.msra.mxu0 0.0
    %873 = vmatpush.msra.mxu0 0.0
    %874 = vmatpush.msra.mxu0 %v509
    %875 = vmatpush.msra.mxu0 %v505
    %876 = vmatpush.msra.mxu0 %v501
    %877 = vmatpush.msra.mxu0 %v497
    %878 = vmatmul.f32.gmra.mxu0 %v820
    %v879 = vpop.f32.mrf.mxu0
    %v880 = vadd.f32 0.0, %v879
    %881 = vdwg.mxu0
    %882 = vmatpush.msra.mxu0 0.0
    %883 = vmatpush.msra.mxu0 0.0
    %884 = vmatpush.msra.mxu0 0.0
    %885 = vmatpush.msra.mxu0 0.0
    %886 = vmatpush.msra.mxu0 0.0
    %887 = vmatpush.msra.mxu0 0.0
    %888 = vmatpush.msra.mxu0 0.0
    %889 = vmatpush.msra.mxu0 0.0
    %890 = vmatpush.msra.mxu0 0.0
    %891 = vmatpush.msra.mxu0 0.0
    %892 = vmatpush.msra.mxu0 0.0
    %893 = vmatpush.msra.mxu0 0.0
    %894 = vmatpush.msra.mxu0 %v510
    %895 = vmatpush.msra.mxu0 %v506
    %896 = vmatpush.msra.mxu0 %v502
    %897 = vmatpush.msra.mxu0 %v498
    %898 = vmatmul.f32.gmra.mxu0 %v820
    %v899 = vpop.f32.mrf.mxu0
    %v900 = vadd.f32 0.0, %v899
    %901 = vdwg.mxu0
    %v902 = vadd.f32 %v815, %v840
    %v903 = vadd.f32 %v816, %v860
    %v904 = vadd.f32 %v817, %v880
    %v905 = vadd.f32 %v818, %v900
    %v906 = vxor.u32 %v902, 2147483648
    %v907 = vmul.f32 %v906, 1.442695
    %v908 = vpow.pop %v907
    %v909 = vadd.f32 %v908, 1.0
    %v910 = vrcp.pop %v909
    %v911 = vmul.f32 %v909, %v910
    %v912 = vsub.f32 1.0, %v911
    %v913 = vmul.f32 %v910, %v912
    %v914 = vadd.f32 %v910, %v913
    %vm915 = vweird.f32 %v909
    %vm916 = vweird.f32 %v910
    %vm917 = vmor %vm915, %vm916
    %v918 = vsel %vm917, %v910, %v914
    %v919 = vand.u32 2147483647, %v909
    %vm920 = vcmp.eq.f32.partialorder %v919, 8.507059e+37
    %v921 = vand.u32 %v909, 2147483648
    %v922 = vor.u32 1.1754944e-38, %v921
    %v923 = vsel %vm920, %v922, %v918
    %v924 = vmul.f32 1.0, %v923
    %v925 = vxor.u32 %v903, 2147483648
    %v926 = vmul.f32 %v925, 1.442695
    %v927 = vpow.pop %v926
    %v928 = vadd.f32 %v927, 1.0
    %v929 = vrcp.pop %v928
    %v930 = vmul.f32 %v928, %v929
    %v931 = vsub.f32 1.0, %v930
    %v932 = vmul.f32 %v929, %v931
    %v933 = vadd.f32 %v929, %v932
    %vm934 = vweird.f32 %v928
    %vm935 = vweird.f32 %v929
    %vm936 = vmor %vm934, %vm935
    %v937 = vsel %vm936, %v929, %v933
    %v938 = vand.u32 2147483647, %v928
    %vm939 = vcmp.eq.f32.partialorder %v938, 8.507059e+37
    %v940 = vand.u32 %v928, 2147483648
    %v941 = vor.u32 1.1754944e-38, %v940
    %v942 = vsel %vm939, %v941, %v937
    %v943 = vmul.f32 1.0, %v942
    %v944 = vtanh.pop %v904
    %v945 = vxor.u32 %v905, 2147483648
    %v946 = vmul.f32 %v945, 1.442695
    %v947 = vpow.pop %v946
    %v948 = vadd.f32 %v947, 1.0
    %v949 = vrcp.pop %v948
    %v950 = vmul.f32 %v948, %v949
    %v951 = vsub.f32 1.0, %v950
    %v952 = vmul.f32 %v949, %v951
    %v953 = vadd.f32 %v949, %v952
    %vm954 = vweird.f32 %v948
    %vm955 = vweird.f32 %v949
    %vm956 = vmor %vm954, %vm955
    %v957 = vsel %vm956, %v949, %v953
    %v958 = vand.u32 2147483647, %v948
    %vm959 = vcmp.eq.f32.partialorder %v958, 8.507059e+37
    %v960 = vand.u32 %v948, 2147483648
    %v961 = vor.u32 1.1754944e-38, %v960
    %v962 = vsel %vm959, %v961, %v957
    %v963 = vmul.f32 1.0, %v962
    %v964 = vmul.f32 %v943, %v812
    %v965 = vmul.f32 %v924, %v944
    %v966 = vadd.f32 %v964, %v965
    %v967 = vtanh.pop %v966
    %v968 = vmul.f32 %v963, %v967
    %v969 = vld [vmem:[#allocation5 + $0x80] sm:$0xff]
    %v970 = vld [vmem:[#allocation5 + $0x88] sm:$0xff]
    %v971 = vld [vmem:[#allocation5 + $0x90] sm:$0xff]
    %v972 = vld [vmem:[#allocation5 + $0x98] sm:$0xff]
    %v974 = vsel %vm145, %v968, 0
    %976 = vmatpush.msra.mxu0 0.0
    %977 = vmatpush.msra.mxu0 0.0
    %978 = vmatpush.msra.mxu0 0.0
    %979 = vmatpush.msra.mxu0 0.0
    %980 = vmatpush.msra.mxu0 0.0
    %981 = vmatpush.msra.mxu0 0.0
    %982 = vmatpush.msra.mxu0 0.0
    %983 = vmatpush.msra.mxu0 0.0
    %984 = vmatpush.msra.mxu0 0.0
    %985 = vmatpush.msra.mxu0 0.0
    %986 = vmatpush.msra.mxu0 0.0
    %987 = vmatpush.msra.mxu0 0.0
    %988 = vmatpush.msra.mxu0 %v507
    %989 = vmatpush.msra.mxu0 %v503
    %990 = vmatpush.msra.mxu0 %v499
    %991 = vmatpush.msra.mxu0 %v495
    %992 = vmatmul.f32.gmra.mxu0 %v974
    %v993 = vpop.f32.mrf.mxu0
    %v994 = vadd.f32 0.0, %v993
    %995 = vdwg.mxu0
    %996 = vmatpush.msra.mxu0 0.0
    %997 = vmatpush.msra.mxu0 0.0
    %998 = vmatpush.msra.mxu0 0.0
    %999 = vmatpush.msra.mxu0 0.0
    %1000 = vmatpush.msra.mxu0 0.0
    %1001 = vmatpush.msra.mxu0 0.0
    %1002 = vmatpush.msra.mxu0 0.0
    %1003 = vmatpush.msra.mxu0 0.0
    %1004 = vmatpush.msra.mxu0 0.0
    %1005 = vmatpush.msra.mxu0 0.0
    %1006 = vmatpush.msra.mxu0 0.0
    %1007 = vmatpush.msra.mxu0 0.0
    %1008 = vmatpush.msra.mxu0 %v508
    %1009 = vmatpush.msra.mxu0 %v504
    %1010 = vmatpush.msra.mxu0 %v500
    %1011 = vmatpush.msra.mxu0 %v496
    %1012 = vmatmul.f32.gmra.mxu0 %v974
    %v1013 = vpop.f32.mrf.mxu0
    %v1014 = vadd.f32 0.0, %v1013
    %1015 = vdwg.mxu0
    %1016 = vmatpush.msra.mxu0 0.0
    %1017 = vmatpush.msra.mxu0 0.0
    %1018 = vmatpush.msra.mxu0 0.0
    %1019 = vmatpush.msra.mxu0 0.0
    %1020 = vmatpush.msra.mxu0 0.0
    %1021 = vmatpush.msra.mxu0 0.0
    %1022 = vmatpush.msra.mxu0 0.0
    %1023 = vmatpush.msra.mxu0 0.0
    %1024 = vmatpush.msra.mxu0 0.0
    %1025 = vmatpush.msra.mxu0 0.0
    %1026 = vmatpush.msra.mxu0 0.0
    %1027 = vmatpush.msra.mxu0 0.0
    %1028 = vmatpush.msra.mxu0 %v509
    %1029 = vmatpush.msra.mxu0 %v505
    %1030 = vmatpush.msra.mxu0 %v501
    %1031 = vmatpush.msra.mxu0 %v497
    %1032 = vmatmul.f32.gmra.mxu0 %v974
    %v1033 = vpop.f32.mrf.mxu0
    %v1034 = vadd.f32 0.0, %v1033
    %1035 = vdwg.mxu0
    %1036 = vmatpush.msra.mxu0 0.0
    %1037 = vmatpush.msra.mxu0 0.0
    %1038 = vmatpush.msra.mxu0 0.0
    %1039 = vmatpush.msra.mxu0 0.0
    %1040 = vmatpush.msra.mxu0 0.0
    %1041 = vmatpush.msra.mxu0 0.0
    %1042 = vmatpush.msra.mxu0 0.0
    %1043 = vmatpush.msra.mxu0 0.0
    %1044 = vmatpush.msra.mxu0 0.0
    %1045 = vmatpush.msra.mxu0 0.0
    %1046 = vmatpush.msra.mxu0 0.0
    %1047 = vmatpush.msra.mxu0 0.0
    %1048 = vmatpush.msra.mxu0 %v510
    %1049 = vmatpush.msra.mxu0 %v506
    %1050 = vmatpush.msra.mxu0 %v502
    %1051 = vmatpush.msra.mxu0 %v498
    %1052 = vmatmul.f32.gmra.mxu0 %v974
    %v1053 = vpop.f32.mrf.mxu0
    %v1054 = vadd.f32 0.0, %v1053
    %1055 = vdwg.mxu0
    %v1056 = vadd.f32 %v969, %v994
    %v1057 = vadd.f32 %v970, %v1014
    %v1058 = vadd.f32 %v971, %v1034
    %v1059 = vadd.f32 %v972, %v1054
    %v1060 = vxor.u32 %v1056, 2147483648
    %v1061 = vmul.f32 %v1060, 1.442695
    %v1062 = vpow.pop %v1061
    %v1063 = vadd.f32 %v1062, 1.0
    %v1064 = vrcp.pop %v1063
    %v1065 = vmul.f32 %v1063, %v1064
    %v1066 = vsub.f32 1.0, %v1065
    %v1067 = vmul.f32 %v1064, %v1066
    %v1068 = vadd.f32 %v1064, %v1067
    %vm1069 = vweird.f32 %v1063
    %vm1070 = vweird.f32 %v1064
    %vm1071 = vmor %vm1069, %vm1070
    %v1072 = vsel %vm1071, %v1064, %v1068
    %v1073 = vand.u32 2147483647, %v1063
    %vm1074 = vcmp.eq.f32.partialorder %v1073, 8.507059e+37
    %v1075 = vand.u32 %v1063, 2147483648
    %v1076 = vor.u32 1.1754944e-38, %v1075
    %v1077 = vsel %vm1074, %v1076, %v1072
    %v1078 = vmul.f32 1.0, %v1077
    %v1079 = vxor.u32 %v1057, 2147483648
    %v1080 = vmul.f32 %v1079, 1.442695
    %v1081 = vpow.pop %v1080
    %v1082 = vadd.f32 %v1081, 1.0
    %v1083 = vrcp.pop %v1082
    %v1084 = vmul.f32 %v1082, %v1083
    %v1085 = vsub.f32 1.0, %v1084
    %v1086 = vmul.f32 %v1083, %v1085
    %v1087 = vadd.f32 %v1083, %v1086
    %vm1088 = vweird.f32 %v1082
    %vm1089 = vweird.f32 %v1083
    %vm1090 = vmor %vm1088, %vm1089
    %v1091 = vsel %vm1090, %v1083, %v1087
    %v1092 = vand.u32 2147483647, %v1082
    %vm1093 = vcmp.eq.f32.partialorder %v1092, 8.507059e+37
    %v1094 = vand.u32 %v1082, 2147483648
    %v1095 = vor.u32 1.1754944e-38, %v1094
    %v1096 = vsel %vm1093, %v1095, %v1091
    %v1097 = vmul.f32 1.0, %v1096
    %v1098 = vtanh.pop %v1058
    %v1099 = vxor.u32 %v1059, 2147483648
    %v1100 = vmul.f32 %v1099, 1.442695
    %v1101 = vpow.pop %v1100
    %v1102 = vadd.f32 %v1101, 1.0
    %v1103 = vrcp.pop %v1102
    %v1104 = vmul.f32 %v1102, %v1103
    %v1105 = vsub.f32 1.0, %v1104
    %v1106 = vmul.f32 %v1103, %v1105
    %v1107 = vadd.f32 %v1103, %v1106
    %vm1108 = vweird.f32 %v1102
    %vm1109 = vweird.f32 %v1103
    %vm1110 = vmor %vm1108, %vm1109
    %v1111 = vsel %vm1110, %v1103, %v1107
    %v1112 = vand.u32 2147483647, %v1102
    %vm1113 = vcmp.eq.f32.partialorder %v1112, 8.507059e+37
    %v1114 = vand.u32 %v1102, 2147483648
    %v1115 = vor.u32 1.1754944e-38, %v1114
    %v1116 = vsel %vm1113, %v1115, %v1111
    %v1117 = vmul.f32 1.0, %v1116
    %v1118 = vmul.f32 %v1097, %v966
    %v1119 = vmul.f32 %v1078, %v1098
    %v1120 = vadd.f32 %v1118, %v1119
    %v1121 = vtanh.pop %v1120
    %v1122 = vmul.f32 %v1117, %v1121
    %v1123 = vld [vmem:[#allocation5 + $0x60] sm:$0xff]
    %v1124 = vld [vmem:[#allocation5 + $0x68] sm:$0xff]
    %v1125 = vld [vmem:[#allocation5 + $0x70] sm:$0xff]
    %v1126 = vld [vmem:[#allocation5 + $0x78] sm:$0xff]
    %v1128 = vsel %vm145, %v1122, 0
    %1130 = vmatpush.msra.mxu0 0.0
    %1131 = vmatpush.msra.mxu0 0.0
    %1132 = vmatpush.msra.mxu0 0.0
    %1133 = vmatpush.msra.mxu0 0.0
    %1134 = vmatpush.msra.mxu0 0.0
    %1135 = vmatpush.msra.mxu0 0.0
    %1136 = vmatpush.msra.mxu0 0.0
    %1137 = vmatpush.msra.mxu0 0.0
    %1138 = vmatpush.msra.mxu0 0.0
    %1139 = vmatpush.msra.mxu0 0.0
    %1140 = vmatpush.msra.mxu0 0.0
    %1141 = vmatpush.msra.mxu0 0.0
    %1142 = vmatpush.msra.mxu0 %v507
    %1143 = vmatpush.msra.mxu0 %v503
    %1144 = vmatpush.msra.mxu0 %v499
    %1145 = vmatpush.msra.mxu0 %v495
    %1146 = vmatmul.f32.gmra.mxu0 %v1128
    %v1147 = vpop.f32.mrf.mxu0
    %v1148 = vadd.f32 0.0, %v1147
    %1149 = vdwg.mxu0
    %1150 = vmatpush.msra.mxu0 0.0
    %1151 = vmatpush.msra.mxu0 0.0
    %1152 = vmatpush.msra.mxu0 0.0
    %1153 = vmatpush.msra.mxu0 0.0
    %1154 = vmatpush.msra.mxu0 0.0
    %1155 = vmatpush.msra.mxu0 0.0
    %1156 = vmatpush.msra.mxu0 0.0
    %1157 = vmatpush.msra.mxu0 0.0
    %1158 = vmatpush.msra.mxu0 0.0
    %1159 = vmatpush.msra.mxu0 0.0
    %1160 = vmatpush.msra.mxu0 0.0
    %1161 = vmatpush.msra.mxu0 0.0
    %1162 = vmatpush.msra.mxu0 %v508
    %1163 = vmatpush.msra.mxu0 %v504
    %1164 = vmatpush.msra.mxu0 %v500
    %1165 = vmatpush.msra.mxu0 %v496
    %1166 = vmatmul.f32.gmra.mxu0 %v1128
    %v1167 = vpop.f32.mrf.mxu0
    %v1168 = vadd.f32 0.0, %v1167
    %1169 = vdwg.mxu0
    %1170 = vmatpush.msra.mxu0 0.0
    %1171 = vmatpush.msra.mxu0 0.0
    %1172 = vmatpush.msra.mxu0 0.0
    %1173 = vmatpush.msra.mxu0 0.0
    %1174 = vmatpush.msra.mxu0 0.0
    %1175 = vmatpush.msra.mxu0 0.0
    %1176 = vmatpush.msra.mxu0 0.0
    %1177 = vmatpush.msra.mxu0 0.0
    %1178 = vmatpush.msra.mxu0 0.0
    %1179 = vmatpush.msra.mxu0 0.0
    %1180 = vmatpush.msra.mxu0 0.0
    %1181 = vmatpush.msra.mxu0 0.0
    %1182 = vmatpush.msra.mxu0 %v509
    %1183 = vmatpush.msra.mxu0 %v505
    %1184 = vmatpush.msra.mxu0 %v501
    %1185 = vmatpush.msra.mxu0 %v497
    %1186 = vmatmul.f32.gmra.mxu0 %v1128
    %v1187 = vpop.f32.mrf.mxu0
    %v1188 = vadd.f32 0.0, %v1187
    %1189 = vdwg.mxu0
    %1190 = vmatpush.msra.mxu0 0.0
    %1191 = vmatpush.msra.mxu0 0.0
    %1192 = vmatpush.msra.mxu0 0.0
    %1193 = vmatpush.msra.mxu0 0.0
    %1194 = vmatpush.msra.mxu0 0.0
    %1195 = vmatpush.msra.mxu0 0.0
    %1196 = vmatpush.msra.mxu0 0.0
    %1197 = vmatpush.msra.mxu0 0.0
    %1198 = vmatpush.msra.mxu0 0.0
    %1199 = vmatpush.msra.mxu0 0.0
    %1200 = vmatpush.msra.mxu0 0.0
    %1201 = vmatpush.msra.mxu0 0.0
    %1202 = vmatpush.msra.mxu0 %v510
    %1203 = vmatpush.msra.mxu0 %v506
    %1204 = vmatpush.msra.mxu0 %v502
    %1205 = vmatpush.msra.mxu0 %v498
    %1206 = vmatmul.f32.gmra.mxu0 %v1128
    %v1207 = vpop.f32.mrf.mxu0
    %v1208 = vadd.f32 0.0, %v1207
    %1209 = vdwg.mxu0
    %v1210 = vadd.f32 %v1123, %v1148
    %v1211 = vadd.f32 %v1124, %v1168
    %v1212 = vadd.f32 %v1125, %v1188
    %v1213 = vadd.f32 %v1126, %v1208
    %v1214 = vxor.u32 %v1210, 2147483648
    %v1215 = vmul.f32 %v1214, 1.442695
    %v1216 = vpow.pop %v1215
    %v1217 = vadd.f32 %v1216, 1.0
    %v1218 = vrcp.pop %v1217
    %v1219 = vmul.f32 %v1217, %v1218
    %v1220 = vsub.f32 1.0, %v1219
    %v1221 = vmul.f32 %v1218, %v1220
    %v1222 = vadd.f32 %v1218, %v1221
    %vm1223 = vweird.f32 %v1217
    %vm1224 = vweird.f32 %v1218
    %vm1225 = vmor %vm1223, %vm1224
    %v1226 = vsel %vm1225, %v1218, %v1222
    %v1227 = vand.u32 2147483647, %v1217
    %vm1228 = vcmp.eq.f32.partialorder %v1227, 8.507059e+37
    %v1229 = vand.u32 %v1217, 2147483648
    %v1230 = vor.u32 1.1754944e-38, %v1229
    %v1231 = vsel %vm1228, %v1230, %v1226
    %v1232 = vmul.f32 1.0, %v1231
    %v1233 = vxor.u32 %v1211, 2147483648
    %v1234 = vmul.f32 %v1233, 1.442695
    %v1235 = vpow.pop %v1234
    %v1236 = vadd.f32 %v1235, 1.0
    %v1237 = vrcp.pop %v1236
    %v1238 = vmul.f32 %v1236, %v1237
    %v1239 = vsub.f32 1.0, %v1238
    %v1240 = vmul.f32 %v1237, %v1239
    %v1241 = vadd.f32 %v1237, %v1240
    %vm1242 = vweird.f32 %v1236
    %vm1243 = vweird.f32 %v1237
    %vm1244 = vmor %vm1242, %vm1243
    %v1245 = vsel %vm1244, %v1237, %v1241
    %v1246 = vand.u32 2147483647, %v1236
    %vm1247 = vcmp.eq.f32.partialorder %v1246, 8.507059e+37
    %v1248 = vand.u32 %v1236, 2147483648
    %v1249 = vor.u32 1.1754944e-38, %v1248
    %v1250 = vsel %vm1247, %v1249, %v1245
    %v1251 = vmul.f32 1.0, %v1250
    %v1252 = vtanh.pop %v1212
    %v1253 = vxor.u32 %v1213, 2147483648
    %v1254 = vmul.f32 %v1253, 1.442695
    %v1255 = vpow.pop %v1254
    %v1256 = vadd.f32 %v1255, 1.0
    %v1257 = vrcp.pop %v1256
    %v1258 = vmul.f32 %v1256, %v1257
    %v1259 = vsub.f32 1.0, %v1258
    %v1260 = vmul.f32 %v1257, %v1259
    %v1261 = vadd.f32 %v1257, %v1260
    %vm1262 = vweird.f32 %v1256
    %vm1263 = vweird.f32 %v1257
    %vm1264 = vmor %vm1262, %vm1263
    %v1265 = vsel %vm1264, %v1257, %v1261
    %v1266 = vand.u32 2147483647, %v1256
    %vm1267 = vcmp.eq.f32.partialorder %v1266, 8.507059e+37
    %v1268 = vand.u32 %v1256, 2147483648
    %v1269 = vor.u32 1.1754944e-38, %v1268
    %v1270 = vsel %vm1267, %v1269, %v1265
    %v1271 = vmul.f32 1.0, %v1270
    %v1272 = vmul.f32 %v1251, %v1120
    %v1273 = vmul.f32 %v1232, %v1252
    %v1274 = vadd.f32 %v1272, %v1273
    %v1275 = vtanh.pop %v1274
    %v1276 = vmul.f32 %v1271, %v1275
    %v1277 = vld [vmem:[#allocation5 + $0x40] sm:$0xff]
    %v1278 = vld [vmem:[#allocation5 + $0x48] sm:$0xff]
    %v1279 = vld [vmem:[#allocation5 + $0x50] sm:$0xff]
    %v1280 = vld [vmem:[#allocation5 + $0x58] sm:$0xff]
    %v1282 = vsel %vm145, %v1276, 0
    %1284 = vmatpush.msra.mxu0 0.0
    %1285 = vmatpush.msra.mxu0 0.0
    %1286 = vmatpush.msra.mxu0 0.0
    %1287 = vmatpush.msra.mxu0 0.0
    %1288 = vmatpush.msra.mxu0 0.0
    %1289 = vmatpush.msra.mxu0 0.0
    %1290 = vmatpush.msra.mxu0 0.0
    %1291 = vmatpush.msra.mxu0 0.0
    %1292 = vmatpush.msra.mxu0 0.0
    %1293 = vmatpush.msra.mxu0 0.0
    %1294 = vmatpush.msra.mxu0 0.0
    %1295 = vmatpush.msra.mxu0 0.0
    %1296 = vmatpush.msra.mxu0 %v507
    %1297 = vmatpush.msra.mxu0 %v503
    %1298 = vmatpush.msra.mxu0 %v499
    %1299 = vmatpush.msra.mxu0 %v495
    %1300 = vmatmul.f32.gmra.mxu0 %v1282
    %v1301 = vpop.f32.mrf.mxu0
    %v1302 = vadd.f32 0.0, %v1301
    %1303 = vdwg.mxu0
    %1304 = vmatpush.msra.mxu0 0.0
    %1305 = vmatpush.msra.mxu0 0.0
    %1306 = vmatpush.msra.mxu0 0.0
    %1307 = vmatpush.msra.mxu0 0.0
    %1308 = vmatpush.msra.mxu0 0.0
    %1309 = vmatpush.msra.mxu0 0.0
    %1310 = vmatpush.msra.mxu0 0.0
    %1311 = vmatpush.msra.mxu0 0.0
    %1312 = vmatpush.msra.mxu0 0.0
    %1313 = vmatpush.msra.mxu0 0.0
    %1314 = vmatpush.msra.mxu0 0.0
    %1315 = vmatpush.msra.mxu0 0.0
    %1316 = vmatpush.msra.mxu0 %v508
    %1317 = vmatpush.msra.mxu0 %v504
    %1318 = vmatpush.msra.mxu0 %v500
    %1319 = vmatpush.msra.mxu0 %v496
    %1320 = vmatmul.f32.gmra.mxu0 %v1282
    %v1321 = vpop.f32.mrf.mxu0
    %v1322 = vadd.f32 0.0, %v1321
    %1323 = vdwg.mxu0
    %1324 = vmatpush.msra.mxu0 0.0
    %1325 = vmatpush.msra.mxu0 0.0
    %1326 = vmatpush.msra.mxu0 0.0
    %1327 = vmatpush.msra.mxu0 0.0
    %1328 = vmatpush.msra.mxu0 0.0
    %1329 = vmatpush.msra.mxu0 0.0
    %1330 = vmatpush.msra.mxu0 0.0
    %1331 = vmatpush.msra.mxu0 0.0
    %1332 = vmatpush.msra.mxu0 0.0
    %1333 = vmatpush.msra.mxu0 0.0
    %1334 = vmatpush.msra.mxu0 0.0
    %1335 = vmatpush.msra.mxu0 0.0
    %1336 = vmatpush.msra.mxu0 %v509
    %1337 = vmatpush.msra.mxu0 %v505
    %1338 = vmatpush.msra.mxu0 %v501
    %1339 = vmatpush.msra.mxu0 %v497
    %1340 = vmatmul.f32.gmra.mxu0 %v1282
    %v1341 = vpop.f32.mrf.mxu0
    %v1342 = vadd.f32 0.0, %v1341
    %1343 = vdwg.mxu0
    %1344 = vmatpush.msra.mxu0 0.0
    %1345 = vmatpush.msra.mxu0 0.0
    %1346 = vmatpush.msra.mxu0 0.0
    %1347 = vmatpush.msra.mxu0 0.0
    %1348 = vmatpush.msra.mxu0 0.0
    %1349 = vmatpush.msra.mxu0 0.0
    %1350 = vmatpush.msra.mxu0 0.0
    %1351 = vmatpush.msra.mxu0 0.0
    %1352 = vmatpush.msra.mxu0 0.0
    %1353 = vmatpush.msra.mxu0 0.0
    %1354 = vmatpush.msra.mxu0 0.0
    %1355 = vmatpush.msra.mxu0 0.0
    %1356 = vmatpush.msra.mxu0 %v510
    %1357 = vmatpush.msra.mxu0 %v506
    %1358 = vmatpush.msra.mxu0 %v502
    %1359 = vmatpush.msra.mxu0 %v498
    %1360 = vmatmul.f32.gmra.mxu0 %v1282
    %v1361 = vpop.f32.mrf.mxu0
    %v1362 = vadd.f32 0.0, %v1361
    %1363 = vdwg.mxu0
    %v1364 = vadd.f32 %v1277, %v1302
    %v1365 = vadd.f32 %v1278, %v1322
    %v1366 = vadd.f32 %v1279, %v1342
    %v1367 = vadd.f32 %v1280, %v1362
    %v1368 = vxor.u32 %v1364, 2147483648
    %v1369 = vmul.f32 %v1368, 1.442695
    %v1370 = vpow.pop %v1369
    %v1371 = vadd.f32 %v1370, 1.0
    %v1372 = vrcp.pop %v1371
    %v1373 = vmul.f32 %v1371, %v1372
    %v1374 = vsub.f32 1.0, %v1373
    %v1375 = vmul.f32 %v1372, %v1374
    %v1376 = vadd.f32 %v1372, %v1375
    %vm1377 = vweird.f32 %v1371
    %vm1378 = vweird.f32 %v1372
    %vm1379 = vmor %vm1377, %vm1378
    %v1380 = vsel %vm1379, %v1372, %v1376
    %v1381 = vand.u32 2147483647, %v1371
    %vm1382 = vcmp.eq.f32.partialorder %v1381, 8.507059e+37
    %v1383 = vand.u32 %v1371, 2147483648
    %v1384 = vor.u32 1.1754944e-38, %v1383
    %v1385 = vsel %vm1382, %v1384, %v1380
    %v1386 = vmul.f32 1.0, %v1385
    %v1387 = vxor.u32 %v1365, 2147483648
    %v1388 = vmul.f32 %v1387, 1.442695
    %v1389 = vpow.pop %v1388
    %v1390 = vadd.f32 %v1389, 1.0
    %v1391 = vrcp.pop %v1390
    %v1392 = vmul.f32 %v1390, %v1391
    %v1393 = vsub.f32 1.0, %v1392
    %v1394 = vmul.f32 %v1391, %v1393
    %v1395 = vadd.f32 %v1391, %v1394
    %vm1396 = vweird.f32 %v1390
    %vm1397 = vweird.f32 %v1391
    %vm1398 = vmor %vm1396, %vm1397
    %v1399 = vsel %vm1398, %v1391, %v1395
    %v1400 = vand.u32 2147483647, %v1390
    %vm1401 = vcmp.eq.f32.partialorder %v1400, 8.507059e+37
    %v1402 = vand.u32 %v1390, 2147483648
    %v1403 = vor.u32 1.1754944e-38, %v1402
    %v1404 = vsel %vm1401, %v1403, %v1399
    %v1405 = vmul.f32 1.0, %v1404
    %v1406 = vtanh.pop %v1366
    %v1407 = vxor.u32 %v1367, 2147483648
    %v1408 = vmul.f32 %v1407, 1.442695
    %v1409 = vpow.pop %v1408
    %v1410 = vadd.f32 %v1409, 1.0
    %v1411 = vrcp.pop %v1410
    %v1412 = vmul.f32 %v1410, %v1411
    %v1413 = vsub.f32 1.0, %v1412
    %v1414 = vmul.f32 %v1411, %v1413
    %v1415 = vadd.f32 %v1411, %v1414
    %vm1416 = vweird.f32 %v1410
    %vm1417 = vweird.f32 %v1411
    %vm1418 = vmor %vm1416, %vm1417
    %v1419 = vsel %vm1418, %v1411, %v1415
    %v1420 = vand.u32 2147483647, %v1410
    %vm1421 = vcmp.eq.f32.partialorder %v1420, 8.507059e+37
    %v1422 = vand.u32 %v1410, 2147483648
    %v1423 = vor.u32 1.1754944e-38, %v1422
    %v1424 = vsel %vm1421, %v1423, %v1419
    %v1425 = vmul.f32 1.0, %v1424
    %v1426 = vmul.f32 %v1405, %v1274
    %v1427 = vmul.f32 %v1386, %v1406
    %v1428 = vadd.f32 %v1426, %v1427
    %v1429 = vtanh.pop %v1428
    %v1430 = vmul.f32 %v1425, %v1429
    %v1431 = vld [vmem:[#allocation5 + $0x20] sm:$0xff]
    %v1432 = vld [vmem:[#allocation5 + $0x28] sm:$0xff]
    %v1433 = vld [vmem:[#allocation5 + $0x30] sm:$0xff]
    %v1434 = vld [vmem:[#allocation5 + $0x38] sm:$0xff]
    %v1436 = vsel %vm145, %v1430, 0
    %1438 = vmatpush.msra.mxu0 0.0
    %1439 = vmatpush.msra.mxu0 0.0
    %1440 = vmatpush.msra.mxu0 0.0
    %1441 = vmatpush.msra.mxu0 0.0
    %1442 = vmatpush.msra.mxu0 0.0
    %1443 = vmatpush.msra.mxu0 0.0
    %1444 = vmatpush.msra.mxu0 0.0
    %1445 = vmatpush.msra.mxu0 0.0
    %1446 = vmatpush.msra.mxu0 0.0
    %1447 = vmatpush.msra.mxu0 0.0
    %1448 = vmatpush.msra.mxu0 0.0
    %1449 = vmatpush.msra.mxu0 0.0
    %1450 = vmatpush.msra.mxu0 %v507
    %1451 = vmatpush.msra.mxu0 %v503
    %1452 = vmatpush.msra.mxu0 %v499
    %1453 = vmatpush.msra.mxu0 %v495
    %1454 = vmatmul.f32.gmra.mxu0 %v1436
    %v1455 = vpop.f32.mrf.mxu0
    %v1456 = vadd.f32 0.0, %v1455
    %1457 = vdwg.mxu0
    %1458 = vmatpush.msra.mxu0 0.0
    %1459 = vmatpush.msra.mxu0 0.0
    %1460 = vmatpush.msra.mxu0 0.0
    %1461 = vmatpush.msra.mxu0 0.0
    %1462 = vmatpush.msra.mxu0 0.0
    %1463 = vmatpush.msra.mxu0 0.0
    %1464 = vmatpush.msra.mxu0 0.0
    %1465 = vmatpush.msra.mxu0 0.0
    %1466 = vmatpush.msra.mxu0 0.0
    %1467 = vmatpush.msra.mxu0 0.0
    %1468 = vmatpush.msra.mxu0 0.0
    %1469 = vmatpush.msra.mxu0 0.0
    %1470 = vmatpush.msra.mxu0 %v508
    %1471 = vmatpush.msra.mxu0 %v504
    %1472 = vmatpush.msra.mxu0 %v500
    %1473 = vmatpush.msra.mxu0 %v496
    %1474 = vmatmul.f32.gmra.mxu0 %v1436
    %v1475 = vpop.f32.mrf.mxu0
    %v1476 = vadd.f32 0.0, %v1475
    %1477 = vdwg.mxu0
    %1478 = vmatpush.msra.mxu0 0.0
    %1479 = vmatpush.msra.mxu0 0.0
    %1480 = vmatpush.msra.mxu0 0.0
    %1481 = vmatpush.msra.mxu0 0.0
    %1482 = vmatpush.msra.mxu0 0.0
    %1483 = vmatpush.msra.mxu0 0.0
    %1484 = vmatpush.msra.mxu0 0.0
    %1485 = vmatpush.msra.mxu0 0.0
    %1486 = vmatpush.msra.mxu0 0.0
    %1487 = vmatpush.msra.mxu0 0.0
    %1488 = vmatpush.msra.mxu0 0.0
    %1489 = vmatpush.msra.mxu0 0.0
    %1490 = vmatpush.msra.mxu0 %v509
    %1491 = vmatpush.msra.mxu0 %v505
    %1492 = vmatpush.msra.mxu0 %v501
    %1493 = vmatpush.msra.mxu0 %v497
    %1494 = vmatmul.f32.gmra.mxu0 %v1436
    %v1495 = vpop.f32.mrf.mxu0
    %v1496 = vadd.f32 0.0, %v1495
    %1497 = vdwg.mxu0
    %1498 = vmatpush.msra.mxu0 0.0
    %1499 = vmatpush.msra.mxu0 0.0
    %1500 = vmatpush.msra.mxu0 0.0
    %1501 = vmatpush.msra.mxu0 0.0
    %1502 = vmatpush.msra.mxu0 0.0
    %1503 = vmatpush.msra.mxu0 0.0
    %1504 = vmatpush.msra.mxu0 0.0
    %1505 = vmatpush.msra.mxu0 0.0
    %1506 = vmatpush.msra.mxu0 0.0
    %1507 = vmatpush.msra.mxu0 0.0
    %1508 = vmatpush.msra.mxu0 0.0
    %1509 = vmatpush.msra.mxu0 0.0
    %1510 = vmatpush.msra.mxu0 %v510
    %1511 = vmatpush.msra.mxu0 %v506
    %1512 = vmatpush.msra.mxu0 %v502
    %1513 = vmatpush.msra.mxu0 %v498
    %1514 = vmatmul.f32.gmra.mxu0 %v1436
    %v1515 = vpop.f32.mrf.mxu0
    %v1516 = vadd.f32 0.0, %v1515
    %1517 = vdwg.mxu0
    %v1518 = vadd.f32 %v1431, %v1456
    %v1519 = vadd.f32 %v1432, %v1476
    %v1520 = vadd.f32 %v1433, %v1496
    %v1521 = vadd.f32 %v1434, %v1516
    %v1522 = vxor.u32 %v1518, 2147483648
    %v1523 = vmul.f32 %v1522, 1.442695
    %v1524 = vpow.pop %v1523
    %v1525 = vadd.f32 %v1524, 1.0
    %v1526 = vrcp.pop %v1525
    %v1527 = vmul.f32 %v1525, %v1526
    %v1528 = vsub.f32 1.0, %v1527
    %v1529 = vmul.f32 %v1526, %v1528
    %v1530 = vadd.f32 %v1526, %v1529
    %vm1531 = vweird.f32 %v1525
    %vm1532 = vweird.f32 %v1526
    %vm1533 = vmor %vm1531, %vm1532
    %v1534 = vsel %vm1533, %v1526, %v1530
    %v1535 = vand.u32 2147483647, %v1525
    %vm1536 = vcmp.eq.f32.partialorder %v1535, 8.507059e+37
    %v1537 = vand.u32 %v1525, 2147483648
    %v1538 = vor.u32 1.1754944e-38, %v1537
    %v1539 = vsel %vm1536, %v1538, %v1534
    %v1540 = vmul.f32 1.0, %v1539
    %v1541 = vxor.u32 %v1519, 2147483648
    %v1542 = vmul.f32 %v1541, 1.442695
    %v1543 = vpow.pop %v1542
    %v1544 = vadd.f32 %v1543, 1.0
    %v1545 = vrcp.pop %v1544
    %v1546 = vmul.f32 %v1544, %v1545
    %v1547 = vsub.f32 1.0, %v1546
    %v1548 = vmul.f32 %v1545, %v1547
    %v1549 = vadd.f32 %v1545, %v1548
    %vm1550 = vweird.f32 %v1544
    %vm1551 = vweird.f32 %v1545
    %vm1552 = vmor %vm1550, %vm1551
    %v1553 = vsel %vm1552, %v1545, %v1549
    %v1554 = vand.u32 2147483647, %v1544
    %vm1555 = vcmp.eq.f32.partialorder %v1554, 8.507059e+37
    %v1556 = vand.u32 %v1544, 2147483648
    %v1557 = vor.u32 1.1754944e-38, %v1556
    %v1558 = vsel %vm1555, %v1557, %v1553
    %v1559 = vmul.f32 1.0, %v1558
    %v1560 = vtanh.pop %v1520
    %v1561 = vxor.u32 %v1521, 2147483648
    %v1562 = vmul.f32 %v1561, 1.442695
    %v1563 = vpow.pop %v1562
    %v1564 = vadd.f32 %v1563, 1.0
    %v1565 = vrcp.pop %v1564
    %v1566 = vmul.f32 %v1564, %v1565
    %v1567 = vsub.f32 1.0, %v1566
    %v1568 = vmul.f32 %v1565, %v1567
    %v1569 = vadd.f32 %v1565, %v1568
    %vm1570 = vweird.f32 %v1564
    %vm1571 = vweird.f32 %v1565
    %vm1572 = vmor %vm1570, %vm1571
    %v1573 = vsel %vm1572, %v1565, %v1569
    %v1574 = vand.u32 2147483647, %v1564
    %vm1575 = vcmp.eq.f32.partialorder %v1574, 8.507059e+37
    %v1576 = vand.u32 %v1564, 2147483648
    %v1577 = vor.u32 1.1754944e-38, %v1576
    %v1578 = vsel %vm1575, %v1577, %v1573
    %v1579 = vmul.f32 1.0, %v1578
    %v1580 = vmul.f32 %v1559, %v1428
    %v1581 = vmul.f32 %v1540, %v1560
    %v1582 = vadd.f32 %v1580, %v1581
    %v1583 = vtanh.pop %v1582
    %v1584 = vmul.f32 %v1579, %v1583
    %v1585 = vld [vmem:[#allocation5] sm:$0xff]
    %v1586 = vld [vmem:[#allocation5 + $0x8] sm:$0xff]
    %v1587 = vld [vmem:[#allocation5 + $0x10] sm:$0xff]
    %v1588 = vld [vmem:[#allocation5 + $0x18] sm:$0xff]
    %v1590 = vsel %vm145, %v1584, 0
    %1592 = vmatpush.msra.mxu0 0.0
    %1593 = vmatpush.msra.mxu0 0.0
    %1594 = vmatpush.msra.mxu0 0.0
    %1595 = vmatpush.msra.mxu0 0.0
    %1596 = vmatpush.msra.mxu0 0.0
    %1597 = vmatpush.msra.mxu0 0.0
    %1598 = vmatpush.msra.mxu0 0.0
    %1599 = vmatpush.msra.mxu0 0.0
    %1600 = vmatpush.msra.mxu0 0.0
    %1601 = vmatpush.msra.mxu0 0.0
    %1602 = vmatpush.msra.mxu0 0.0
    %1603 = vmatpush.msra.mxu0 0.0
    %1604 = vmatpush.msra.mxu0 %v507
    %1605 = vmatpush.msra.mxu0 %v503
    %1606 = vmatpush.msra.mxu0 %v499
    %1607 = vmatpush.msra.mxu0 %v495
    %1608 = vmatmul.f32.gmra.mxu0 %v1590
    %v1609 = vpop.f32.mrf.mxu0
    %v1610 = vadd.f32 0.0, %v1609
    %1611 = vdwg.mxu0
    %1612 = vmatpush.msra.mxu0 0.0
    %1613 = vmatpush.msra.mxu0 0.0
    %1614 = vmatpush.msra.mxu0 0.0
    %1615 = vmatpush.msra.mxu0 0.0
    %1616 = vmatpush.msra.mxu0 0.0
    %1617 = vmatpush.msra.mxu0 0.0
    %1618 = vmatpush.msra.mxu0 0.0
    %1619 = vmatpush.msra.mxu0 0.0
    %1620 = vmatpush.msra.mxu0 0.0
    %1621 = vmatpush.msra.mxu0 0.0
    %1622 = vmatpush.msra.mxu0 0.0
    %1623 = vmatpush.msra.mxu0 0.0
    %1624 = vmatpush.msra.mxu0 %v508
    %1625 = vmatpush.msra.mxu0 %v504
    %1626 = vmatpush.msra.mxu0 %v500
    %1627 = vmatpush.msra.mxu0 %v496
    %1628 = vmatmul.f32.gmra.mxu0 %v1590
    %v1629 = vpop.f32.mrf.mxu0
    %v1630 = vadd.f32 0.0, %v1629
    %1631 = vdwg.mxu0
    %1632 = vmatpush.msra.mxu0 0.0
    %1633 = vmatpush.msra.mxu0 0.0
    %1634 = vmatpush.msra.mxu0 0.0
    %1635 = vmatpush.msra.mxu0 0.0
    %1636 = vmatpush.msra.mxu0 0.0
    %1637 = vmatpush.msra.mxu0 0.0
    %1638 = vmatpush.msra.mxu0 0.0
    %1639 = vmatpush.msra.mxu0 0.0
    %1640 = vmatpush.msra.mxu0 0.0
    %1641 = vmatpush.msra.mxu0 0.0
    %1642 = vmatpush.msra.mxu0 0.0
    %1643 = vmatpush.msra.mxu0 0.0
    %1644 = vmatpush.msra.mxu0 %v509
    %1645 = vmatpush.msra.mxu0 %v505
    %1646 = vmatpush.msra.mxu0 %v501
    %1647 = vmatpush.msra.mxu0 %v497
    %1648 = vmatmul.f32.gmra.mxu0 %v1590
    %v1649 = vpop.f32.mrf.mxu0
    %v1650 = vadd.f32 0.0, %v1649
    %1651 = vdwg.mxu0
    %1652 = vmatpush.msra.mxu0 0.0
    %1653 = vmatpush.msra.mxu0 0.0
    %1654 = vmatpush.msra.mxu0 0.0
    %1655 = vmatpush.msra.mxu0 0.0
    %1656 = vmatpush.msra.mxu0 0.0
    %1657 = vmatpush.msra.mxu0 0.0
    %1658 = vmatpush.msra.mxu0 0.0
    %1659 = vmatpush.msra.mxu0 0.0
    %1660 = vmatpush.msra.mxu0 0.0
    %1661 = vmatpush.msra.mxu0 0.0
    %1662 = vmatpush.msra.mxu0 0.0
    %1663 = vmatpush.msra.mxu0 0.0
    %1664 = vmatpush.msra.mxu0 %v510
    %1665 = vmatpush.msra.mxu0 %v506
    %1666 = vmatpush.msra.mxu0 %v502
    %1667 = vmatpush.msra.mxu0 %v498
    %1668 = vmatmul.f32.gmra.mxu0 %v1590
    %v1669 = vpop.f32.mrf.mxu0
    %v1670 = vadd.f32 0.0, %v1669
    %1671 = vdwg.mxu0
    %v1672 = vadd.f32 %v1585, %v1610
    %v1673 = vadd.f32 %v1586, %v1630
    %v1674 = vadd.f32 %v1587, %v1650
    %v1675 = vadd.f32 %v1588, %v1670
    %v1676 = vxor.u32 %v1672, 2147483648
    %v1677 = vmul.f32 %v1676, 1.442695
    %v1678 = vpow.pop %v1677
    %v1679 = vadd.f32 %v1678, 1.0
    %v1680 = vrcp.pop %v1679
    %v1681 = vmul.f32 %v1679, %v1680
    %v1682 = vsub.f32 1.0, %v1681
    %v1683 = vmul.f32 %v1680, %v1682
    %v1684 = vadd.f32 %v1680, %v1683
    %vm1685 = vweird.f32 %v1679
    %vm1686 = vweird.f32 %v1680
    %vm1687 = vmor %vm1685, %vm1686
    %v1688 = vsel %vm1687, %v1680, %v1684
    %v1689 = vand.u32 2147483647, %v1679
    %vm1690 = vcmp.eq.f32.partialorder %v1689, 8.507059e+37
    %v1691 = vand.u32 %v1679, 2147483648
    %v1692 = vor.u32 1.1754944e-38, %v1691
    %v1693 = vsel %vm1690, %v1692, %v1688
    %v1694 = vmul.f32 1.0, %v1693
    %v1695 = vxor.u32 %v1673, 2147483648
    %v1696 = vmul.f32 %v1695, 1.442695
    %v1697 = vpow.pop %v1696
    %v1698 = vadd.f32 %v1697, 1.0
    %v1699 = vrcp.pop %v1698
    %v1700 = vmul.f32 %v1698, %v1699
    %v1701 = vsub.f32 1.0, %v1700
    %v1702 = vmul.f32 %v1699, %v1701
    %v1703 = vadd.f32 %v1699, %v1702
    %vm1704 = vweird.f32 %v1698
    %vm1705 = vweird.f32 %v1699
    %vm1706 = vmor %vm1704, %vm1705
    %v1707 = vsel %vm1706, %v1699, %v1703
    %v1708 = vand.u32 2147483647, %v1698
    %vm1709 = vcmp.eq.f32.partialorder %v1708, 8.507059e+37
    %v1710 = vand.u32 %v1698, 2147483648
    %v1711 = vor.u32 1.1754944e-38, %v1710
    %v1712 = vsel %vm1709, %v1711, %v1707
    %v1713 = vmul.f32 1.0, %v1712
    %v1714 = vtanh.pop %v1674
    %v1715 = vxor.u32 %v1675, 2147483648
    %v1716 = vmul.f32 %v1715, 1.442695
    %v1717 = vpow.pop %v1716
    %v1718 = vadd.f32 %v1717, 1.0
    %v1719 = vrcp.pop %v1718
    %v1720 = vmul.f32 %v1718, %v1719
    %v1721 = vsub.f32 1.0, %v1720
    %v1722 = vmul.f32 %v1719, %v1721
    %v1723 = vadd.f32 %v1719, %v1722
    %vm1724 = vweird.f32 %v1718
    %vm1725 = vweird.f32 %v1719
    %vm1726 = vmor %vm1724, %vm1725
    %v1727 = vsel %vm1726, %v1719, %v1723
    %v1728 = vand.u32 2147483647, %v1718
    %vm1729 = vcmp.eq.f32.partialorder %v1728, 8.507059e+37
    %v1730 = vand.u32 %v1718, 2147483648
    %v1731 = vor.u32 1.1754944e-38, %v1730
    %v1732 = vsel %vm1729, %v1731, %v1727
    %v1733 = vmul.f32 1.0, %v1732
    %v1734 = vmul.f32 %v1713, %v1582
    %v1735 = vmul.f32 %v1694, %v1714
    %v1736 = vadd.f32 %v1734, %v1735
    %v1737 = vtanh.pop %v1736
    %v1738 = vmul.f32 %v1733, %v1737
    %v1739 = vld [vmem:[#allocation2] sm:$0xff]
    %v1740 = vld [vmem:[%s9] sm:$0xff]
    %v1741 = vld [vmem:[%s9 + $0x8] sm:$0xff]
    %v1742 = vld [vmem:[%s9 + $0x10] sm:$0xff]
    %v1743 = vld [vmem:[%s9 + $0x18] sm:$0xff]
    %v1744 = vld [vmem:[%s10] sm:$0xff]
    %v1745 = vld [vmem:[%s10 + $0x8] sm:$0xff]
    %v1746 = vld [vmem:[%s10 + $0x10] sm:$0xff]
    %v1747 = vld [vmem:[%s10 + $0x18] sm:$0xff]
    %v1749 = vsel %vm145, %v1738, 0
    %1751 = vmatpush.msra.mxu0 0.0
    %1752 = vmatpush.msra.mxu0 0.0
    %1753 = vmatpush.msra.mxu0 0.0
    %1754 = vmatpush.msra.mxu0 0.0
    %1755 = vmatpush.msra.mxu0 0.0
    %1756 = vmatpush.msra.mxu0 0.0
    %1757 = vmatpush.msra.mxu0 0.0
    %1758 = vmatpush.msra.mxu0 0.0
    %1759 = vmatpush.msra.mxu0 0.0
    %1760 = vmatpush.msra.mxu0 0.0
    %1761 = vmatpush.msra.mxu0 0.0
    %1762 = vmatpush.msra.mxu0 0.0
    %1763 = vmatpush.msra.mxu0 %v1747
    %1764 = vmatpush.msra.mxu0 %v1746
    %1765 = vmatpush.msra.mxu0 %v1745
    %1766 = vmatpush.msra.mxu0 %v1744
    %1767 = vmatmul.f32.gmra.mxu0 %v1749
    %v1768 = vpop.f32.mrf.mxu0
    %v1769 = vadd.f32 0.0, %v1768
    %1770 = vdwg.mxu0
    %v1772 = vsel %vm145, %v1739, 0
    %1774 = vmatpush.msra.mxu0 0.0
    %1775 = vmatpush.msra.mxu0 0.0
    %1776 = vmatpush.msra.mxu0 0.0
    %1777 = vmatpush.msra.mxu0 0.0
    %1778 = vmatpush.msra.mxu0 0.0
    %1779 = vmatpush.msra.mxu0 0.0
    %1780 = vmatpush.msra.mxu0 0.0
    %1781 = vmatpush.msra.mxu0 0.0
    %1782 = vmatpush.msra.mxu0 0.0
    %1783 = vmatpush.msra.mxu0 0.0
    %1784 = vmatpush.msra.mxu0 0.0
    %1785 = vmatpush.msra.mxu0 0.0
    %1786 = vmatpush.msra.mxu0 %v1743
    %1787 = vmatpush.msra.mxu0 %v1742
    %1788 = vmatpush.msra.mxu0 %v1741
    %1789 = vmatpush.msra.mxu0 %v1740
    %1790 = vmatmul.f32.gmra.mxu0 %v1772
    %v1791 = vpop.f32.mrf.mxu0
    %v1792 = vadd.f32 %v1769, %v1791
    %1793 = vdwg.mxu0
    %v1794 = vld [vmem:[#allocation3] sm:$0xff]
    %v1795 = vld [vmem:[#allocation16] sm:$0xff]
    %v1796 = vld [vmem:[#allocation16 + $0x8] sm:$0xff]
    %v1797 = vld [vmem:[#allocation16 + $0x10] sm:$0xff]
    %v1798 = vld [vmem:[#allocation16 + $0x18] sm:$0xff]
    %v1800 = vsel %vm145, %v1794, 0
    %1802 = vmatpush.msra.mxu0 0.0
    %1803 = vmatpush.msra.mxu0 0.0
    %1804 = vmatpush.msra.mxu0 0.0
    %1805 = vmatpush.msra.mxu0 0.0
    %1806 = vmatpush.msra.mxu0 0.0
    %1807 = vmatpush.msra.mxu0 0.0
    %1808 = vmatpush.msra.mxu0 0.0
    %1809 = vmatpush.msra.mxu0 0.0
    %1810 = vmatpush.msra.mxu0 0.0
    %1811 = vmatpush.msra.mxu0 0.0
    %1812 = vmatpush.msra.mxu0 0.0
    %1813 = vmatpush.msra.mxu0 0.0
    %1814 = vmatpush.msra.mxu0 %v1798
    %1815 = vmatpush.msra.mxu0 %v1797
    %1816 = vmatpush.msra.mxu0 %v1796
    %1817 = vmatpush.msra.mxu0 %v1795
    %1818 = vmatmul.f32.gmra.mxu0 %v1800
    %v1819 = vpop.f32.mrf.mxu0
    %v1820 = vadd.f32 0.0, %v1819
    %1821 = vdwg.mxu0
    %v1822 = vadd.f32 %v1792, %v1820
    %v1823 = vld [vmem:[#allocation17] sm:$0x1]
    %v1825 = vperm.slane %v1823, 0
    %v1827 = vadd.f32 %v1822, %v1825
    %v1828 = vmax.f32 %v1827, 0.0
    %v1829 = vld [vmem:[%s13] sm:$0x1]
    %v1831 = vperm.slane %v1829, 0
    %v1833 = vmul.f32 %v1828, %v1831
    %1834 = vadd.xlane.f32.xlu0 %v1833
    %v1835 = vpop.xlane.xlu0 %1834
    %s1836 = sld [smem:[#allocation6]]
    %v1837 = vstv %s1836
    %v1838 = vadd.f32 %v1835, %v1837
    %v1839 = vxor.u32 %v1838, 2147483648
    %v1840 = vmul.f32 %v1839, 1.442695
    %v1841 = vpow.pop %v1840
    %v1842 = vadd.f32 %v1841, 1.0
    %v1843 = vrcp.pop %v1842
    %v1844 = vmul.f32 %v1842, %v1843
    %v1845 = vsub.f32 1.0, %v1844
    %v1846 = vmul.f32 %v1843, %v1845
    %v1847 = vadd.f32 %v1843, %v1846
    %vm1848 = vweird.f32 %v1842
    %vm1849 = vweird.f32 %v1843
    %vm1850 = vmor %vm1848, %vm1849
    %v1851 = vsel %vm1850, %v1843, %v1847
    %v1852 = vand.u32 2147483647, %v1842
    %vm1853 = vcmp.eq.f32.partialorder %v1852, 8.507059e+37
    %v1854 = vand.u32 %v1842, 2147483648
    %v1855 = vor.u32 1.1754944e-38, %v1854
    %v1856 = vsel %vm1853, %v1855, %v1851
    %v1857 = vmul.f32 1.0, %v1856
    %1858 = vst [vmem:[%s14] sm:$0xff] %v1857
    // Predicated region
    $region86: #{_forward_impl.1} parent=1 // pred_check
      _
    $region87: #{_forward_impl.1} parent=1 // pred_check_branch
      %1860 = sbr.rel (0) target = $region89
    $region88: #{_forward_impl.1} parent=1 // pred_region
      _
    $region89: #{_forward_impl.1} parent=1 // pred_fallthru
      _
    // Predicated region
    $region90: #{_forward_impl.1} parent=1 // pred_check
      _
    $region91: #{_forward_impl.1} parent=1 // pred_check_branch
      %1862 = sbr.rel (0) target = $region93
    $region92: #{_forward_impl.1} parent=1 // pred_region
      _
    $region93: #{_forward_impl.1} parent=1 // pred_fallthru
      _
    %1863 = vsyncpa [#allocation8], 1
    %1864 = vsyncpa [#allocation15], 1
    %1865 = vsyncpa [#allocation18], 1
    %1866 = vsyncpa [#allocation9], 1
    %1867 = vsyncpa [#allocation11], 1

</llo_original>
